<compile_context>
chip_gen: v7x
topology: tpu7x:2x2x1
jax: 0.10.0
libtpu: 0.0.40
codegen_flags: <defaults>
</compile_context>

<pallas_src>
import jax
import jax.numpy as jnp
from jax import lax
from jax.experimental import pallas as pl
from jax.experimental.pallas import tpu as pltpu

NUM_COUPLING = 5      # NormalizingFlow(5): 5 CouplingLayers, 4 Permutations
HIDDEN = 8            # CouplingLayer(dim=8)
NUM_MID = 3           # three hidden Linear(8, 8) layers per MLP
NEG_SLOPE = 0.01      # nn.LeakyReLU default

LANE_CHUNK = 1024     # in-kernel lane sub-chunk (bounds vreg live ranges)
MAX_TILE_CHUNKS = 8   # BlockSpec tile capped at 8 * LANE_CHUNK = 8192 lanes


def _leaky_relu(h):
    return jnp.maximum(h, NEG_SLOPE * h)


def flow_kernel(x_ref, wf_ref, bf_ref, wm_ref, bm_ref, wl_ref, bl_ref, o_ref):
    """Fused forward of the whole flow on one (2, tile_n) batch tile.

    Layout: batch on lanes, fused (log_s | b) hidden dim on sublanes.
      x_ref : (2, T)            zl = row 0, zr = row 1
      wf/bf : (NC, 16, 1)       packed first Linear(1->16)
      wm/bm : (NC*3, 16, 16/1)  packed block-diagonal hidden Linear(16->16)
      wl/bl : (NC, 2, 16/1)     packed last Linear(16->2): row0=log_s, row1=b
    """
    T = x_ref.shape[1]
    chunk = min(T, LANE_CHUNK)
    assert T % chunk == 0, "tile_n must be a multiple of the in-kernel chunk"
    n_chunks = T // chunk

    def process(off):
        zl = x_ref[0:1, pl.ds(off, chunk)]                # (1, C)
        zr = x_ref[1:2, pl.ds(off, chunk)]                # (1, C)
        for layer in range(NUM_COUPLING):
            # Linear(1 -> 16): broadcasted FMA on the VPU.
            h = wf_ref[layer] * zl + bf_ref[layer]        # (16,1)*(1,C)+(16,1)
            h = _leaky_relu(h)
            # Three block-diagonal Linear(16 -> 16): one MXU matmul each
            # (default precision -> single bf16 pass, f32 accumulate).
            for m in range(NUM_MID):
                midx = layer * NUM_MID + m
                h = jnp.dot(wm_ref[midx], h,
                            preferred_element_type=jnp.float32) + bm_ref[midx]
                h = _leaky_relu(h)
            # Packed last Linear(16 -> 2): row 0 = log_s, row 1 = b.
            sb = jnp.dot(wl_ref[layer], h,
                         preferred_element_type=jnp.float32) + bl_ref[layer]
            yr = zr * jnp.exp(sb[0:1, :]) + sb[1:2, :]    # coupling transform
            if layer < NUM_COUPLING - 1:
                # Fused Permutation layer ([1, 0]): swap the feature rows.
                zl, zr = yr, zl
            else:
                zr = yr
        # Direct row stores (no concatenate temporary).
        o_ref[0:1, pl.ds(off, chunk)] = zl.astype(o_ref.dtype)
        o_ref[1:2, pl.ds(off, chunk)] = zr.astype(o_ref.dtype)

    if n_chunks == 1:
        process(0)
    else:
        def body(c, carry):
            process(pl.multiple_of(c * chunk, chunk))
            return carry
        lax.fori_loop(0, n_chunks, body, 0, unroll=False)


def _choose_tile(n):
    """Lane-dense tile: big enough to amortize per-step overhead, but keep
    >= 2 tiles when the batch allows it (v7x megacore)."""
    n128 = pl.cdiv(n, 128)
    if n128 <= 1:
        return 128
    if n <= 2 * LANE_CHUNK:
        return 128 * pl.cdiv(n128, 2)
    n_chunks = pl.cdiv(n, LANE_CHUNK)
    return LANE_CHUNK * min(MAX_TILE_CHUNKS, pl.cdiv(n_chunks, 2))


def pack_params(p):
    """Pack per-net (log_s, b) weights into one fused MLP per coupling layer."""
    nc, h = NUM_COUPLING, HIDDEN
    wf = p["wfirst"].reshape(nc, 2, h, 1)
    bf = p["bfirst"].reshape(nc, 2, h, 1)
    wm = p["wmid"].reshape(nc, 2, NUM_MID, h, h)
    bm = p["bmid"].reshape(nc, 2, NUM_MID, h, 1)
    wl = p["wlast"].reshape(nc, 2, 1, h)
    bl = p["blast"].reshape(nc, 2, 1, 1)

    wf_p = jnp.concatenate([wf[:, 0], wf[:, 1]], axis=1)              # (nc,16,1)
    bf_p = jnp.concatenate([bf[:, 0], bf[:, 1]], axis=1)              # (nc,16,1)

    zmid = jnp.zeros((nc, NUM_MID, h, h), wm.dtype)
    top = jnp.concatenate([wm[:, 0], zmid], axis=-1)                  # (nc,3,8,16)
    bot = jnp.concatenate([zmid, wm[:, 1]], axis=-1)                  # (nc,3,8,16)
    wm_p = jnp.concatenate([top, bot], axis=-2).reshape(nc * NUM_MID, 2 * h, 2 * h)
    bm_p = jnp.concatenate([bm[:, 0], bm[:, 1]], axis=-2).reshape(nc * NUM_MID, 2 * h, 1)

    zrow = jnp.zeros((nc, 1, h), wl.dtype)
    wl_p = jnp.concatenate([
        jnp.concatenate([wl[:, 0], zrow], axis=-1),                   # log_s row
        jnp.concatenate([zrow, wl[:, 1]], axis=-1),                   # b row
    ], axis=-2)                                                        # (nc,2,16)
    bl_p = jnp.concatenate([bl[:, 0], bl[:, 1]], axis=-2)             # (nc,2,1)
    return wf_p, bf_p, wm_p, bm_p, wl_p, bl_p


def flow_forward(x, params, *, tile_n=None):
    """Pallas forward pass of NormalizingFlow(5).  x: (N, 2) -> (N, 2)."""
    N, D = x.shape
    assert D == 2, "flow expects 2-D feature vectors"

    if tile_n is None:
        tile_n = _choose_tile(N)
    assert tile_n % 128 == 0
    assert tile_n <= LANE_CHUNK or tile_n % LANE_CHUNK == 0

    n_tiles = pl.cdiv(N, tile_n)
    n_pad = n_tiles * tile_n

    # Batch on lanes; pad batch to a multiple of tile_n (padding sliced off).
    x_t = jnp.pad(x.T, ((0, 0), (0, n_pad - N)))

    wf, bf, wm, bm, wl, bl = pack_params(params)

    def full_spec(arr):
        return pl.BlockSpec(arr.shape, lambda i, nd=arr.ndim: (0,) * nd)

    y_t = pl.pallas_call(
        flow_kernel,
        out_shape=jax.ShapeDtypeStruct((2, n_pad), x.dtype),
        grid=(n_tiles,),
        in_specs=[
            pl.BlockSpec((2, tile_n), lambda i: (0, i)),
            full_spec(wf), full_spec(bf),
            full_spec(wm), full_spec(bm),
            full_spec(wl), full_spec(bl),
        ],
        out_specs=pl.BlockSpec((2, tile_n), lambda i: (0, i)),
        compiler_params=pltpu.CompilerParams(
            dimension_semantics=("parallel",)),
    )(x_t, wf, bf, wm, bm, wl, bl)

    return y_t[:, :N].T


# ----------------------------------------------------------------------------
# Parameter construction (PyTorch-Linear-style uniform init) and a pure-JAX
# reference implementation mirroring the nn.Module semantics.
# ----------------------------------------------------------------------------
def init_params(key):
    nc, h = NUM_COUPLING, HIDDEN
    ks = jax.random.split(key, 6)

    def u(k, shape, fan_in):
        bound = 1.0 / (fan_in ** 0.5)
        return jax.random.uniform(k, shape, jnp.float32, -bound, bound)

    return dict(
        wfirst=u(ks[0], (nc * 2, h, 1), 1),
        bfirst=u(ks[1], (nc * 2, h, 1), 1),
        wmid=u(ks[2], (nc * 2 * NUM_MID, h, h), h),
        bmid=u(ks[3], (nc * 2 * NUM_MID, h, 1), h),
        wlast=u(ks[4], (nc * 2, 1, h), h),
        blast=u(ks[5], (nc * 2, 1, 1), h),
    )


def _mlp_ref(zl_col, p, idx):
    # zl_col: (N, 1)
    h = zl_col * p["wfirst"][idx][:, 0][None, :] + p["bfirst"][idx][:, 0][None, :]
    h = jnp.maximum(h, NEG_SLOPE * h)
    for m in range(NUM_MID):
        midx = idx * NUM_MID + m
        h = jnp.dot(h, p["wmid"][midx].T) + p["bmid"][midx][:, 0][None, :]
        h = jnp.maximum(h, NEG_SLOPE * h)
    out = jnp.dot(h, p["wlast"][idx][0][:, None]) + p["blast"][idx][0, 0]
    return out                                            # (N, 1)


def flow_forward_reference(x, p):
    zl, zr = x[:, 0:1], x[:, 1:2]
    for layer in range(NUM_COUPLING):
        log_s = _mlp_ref(zl, p, layer * 2 + 0)
        b = _mlp_ref(zl, p, layer * 2 + 1)
        yr = zr * jnp.exp(log_s) + b
        if layer < NUM_COUPLING - 1:
            zl, zr = yr, zl                               # Permutation layer
        else:
            zr = yr
    return jnp.concatenate([zl, zr], axis=1)


if __name__ == "__main__":
    key = jax.random.PRNGKey(0)
    kx, kx2, kp = jax.random.split(key, 3)

    params = init_params(kp)

    # Primary small test: (256, 2) point cloud -> single in-kernel chunk path.
    N = 256
    x = jax.random.normal(kx, (N, 2), dtype=jnp.float32)
    y = jax.block_until_ready(flow_forward(x, params))
    y_ref = flow_forward_reference(x, params)
    assert y.shape == (N, 2)
    # Default (single-pass bf16-input) MXU precision in the kernel vs. the
    # plain-JAX reference -> loose tolerance; a structural bug would be O(1).
    assert jnp.allclose(y, y_ref, atol=5e-2, rtol=5e-2), (
        "Pallas flow output does not match JAX reference")

    # Non-divisible batch size (padding) path.
    y_odd = jax.block_until_ready(flow_forward(x[:200], params))
    assert jnp.allclose(y_odd, y_ref[:200], atol=5e-2, rtol=5e-2)

    # Larger batch exercising the big-tile + in-kernel lane-chunk loop path.
    N2 = 2176
    x2 = jax.random.normal(kx2, (N2, 2), dtype=jnp.float32)
    y2 = jax.block_until_ready(flow_forward(x2, params))
    y2_ref = flow_forward_reference(x2, params)
    assert jnp.allclose(y2, y2_ref, atol=5e-2, rtol=5e-2), (
        "Pallas flow output (chunked path) does not match JAX reference")

    print("KERNEL_OK")
</pallas_src>

<mosaic_0001>
module attributes {stable_mosaic.version = 11 : i64} {
  func.func @flow_kernel(%arg0: i32, %arg1: memref<2x128xf32, #tpu.memory_space<vmem>>, %arg2: memref<5x16x1xf32, #tpu.memory_space<vmem>>, %arg3: memref<5x16x1xf32, #tpu.memory_space<vmem>>, %arg4: memref<15x16x16xf32, #tpu.memory_space<vmem>>, %arg5: memref<15x16x1xf32, #tpu.memory_space<vmem>>, %arg6: memref<5x2x16xf32, #tpu.memory_space<vmem>>, %arg7: memref<5x2x1xf32, #tpu.memory_space<vmem>>, %arg8: memref<2x128xf32, #tpu.memory_space<vmem>>) attributes {dimension_semantics = [#tpu.dimension_semantics<parallel>], iteration_bounds = array<i64: 2>, scalar_prefetch = 0 : i64, scratch_operands = 0 : i64, tpu.core_type = #tpu.core_type<tc>, window_params = [{transform_indices = @transform_0, window_bounds = array<i64: 2, 128>}, {pipeline_mode = #tpu.pipeline_mode<synchronous>, transform_indices = @transform_1, window_bounds = array<i64: 5, 16, 1>}, {pipeline_mode = #tpu.pipeline_mode<synchronous>, transform_indices = @transform_2, window_bounds = array<i64: 5, 16, 1>}, {pipeline_mode = #tpu.pipeline_mode<synchronous>, transform_indices = @transform_3, window_bounds = array<i64: 15, 16, 16>}, {pipeline_mode = #tpu.pipeline_mode<synchronous>, transform_indices = @transform_4, window_bounds = array<i64: 15, 16, 1>}, {pipeline_mode = #tpu.pipeline_mode<synchronous>, transform_indices = @transform_5, window_bounds = array<i64: 5, 2, 16>}, {pipeline_mode = #tpu.pipeline_mode<synchronous>, transform_indices = @transform_6, window_bounds = array<i64: 5, 2, 1>}, {transform_indices = @transform_7, window_bounds = array<i64: 2, 128>}]} {
    %c0 = arith.constant 0 : index
    %c0_0 = arith.constant 0 : index
    %0 = vector.load %arg1[%c0, %c0_0] : memref<2x128xf32, #tpu.memory_space<vmem>>, vector<1x128xf32>
    %c1 = arith.constant 1 : index
    %c0_1 = arith.constant 0 : index
    %1 = vector.load %arg1[%c1, %c0_1] : memref<2x128xf32, #tpu.memory_space<vmem>>, vector<1x128xf32>
    %c0_2 = arith.constant 0 : index
    %c0_3 = arith.constant 0 : index
    %c0_4 = arith.constant 0 : index
    %2 = vector.load %arg2[%c0_2, %c0_3, %c0_4] : memref<5x16x1xf32, #tpu.memory_space<vmem>>, vector<1x16x1xf32>
    %3 = vector.shape_cast %2 : vector<1x16x1xf32> to vector<16x1xf32>
    %4 = vector.broadcast %3 : vector<16x1xf32> to vector<16x128xf32>
    %5 = vector.broadcast %0 : vector<1x128xf32> to vector<16x128xf32>
    %6 = arith.mulf %4, %5 : vector<16x128xf32>
    %c0_5 = arith.constant 0 : index
    %c0_6 = arith.constant 0 : index
    %c0_7 = arith.constant 0 : index
    %7 = vector.load %arg3[%c0_5, %c0_6, %c0_7] : memref<5x16x1xf32, #tpu.memory_space<vmem>>, vector<1x16x1xf32>
    %8 = vector.shape_cast %7 : vector<1x16x1xf32> to vector<16x1xf32>
    %9 = vector.broadcast %8 : vector<16x1xf32> to vector<16x128xf32>
    %10 = arith.addf %6, %9 : vector<16x128xf32>
    %cst = arith.constant 0.00999999977 : f32
    %11 = vector.broadcast %cst : f32 to vector<16x128xf32>
    %12 = arith.mulf %11, %10 : vector<16x128xf32>
    %13 = arith.maximumf %10, %12 : vector<16x128xf32>
    %c0_8 = arith.constant 0 : index
    %c0_9 = arith.constant 0 : index
    %c0_10 = arith.constant 0 : index
    %14 = vector.load %arg4[%c0_8, %c0_9, %c0_10] : memref<15x16x16xf32, #tpu.memory_space<vmem>>, vector<1x16x16xf32>
    %15 = vector.shape_cast %14 : vector<1x16x16xf32> to vector<16x16xf32>
    %cst_11 = arith.constant dense<0.000000e+00> : vector<16x128xf32>
    %16 = tpu.matmul %15, %13, %cst_11 {dimension_numbers = #tpu.dot_dimension_numbers<[1], [0], [0], [1], [0, 0, 1, 1], [], []>} : vector<16x16xf32>, vector<16x128xf32>, vector<16x128xf32> -> vector<16x128xf32>
    %c0_12 = arith.constant 0 : index
    %c0_13 = arith.constant 0 : index
    %c0_14 = arith.constant 0 : index
    %17 = vector.load %arg5[%c0_12, %c0_13, %c0_14] : memref<15x16x1xf32, #tpu.memory_space<vmem>>, vector<1x16x1xf32>
    %18 = vector.shape_cast %17 : vector<1x16x1xf32> to vector<16x1xf32>
    %19 = vector.broadcast %18 : vector<16x1xf32> to vector<16x128xf32>
    %20 = arith.addf %16, %19 : vector<16x128xf32>
    %cst_15 = arith.constant 0.00999999977 : f32
    %21 = vector.broadcast %cst_15 : f32 to vector<16x128xf32>
    %22 = arith.mulf %21, %20 : vector<16x128xf32>
    %23 = arith.maximumf %20, %22 : vector<16x128xf32>
    %c1_16 = arith.constant 1 : index
    %c0_17 = arith.constant 0 : index
    %c0_18 = arith.constant 0 : index
    %24 = vector.load %arg4[%c1_16, %c0_17, %c0_18] : memref<15x16x16xf32, #tpu.memory_space<vmem>>, vector<1x16x16xf32>
    %25 = vector.shape_cast %24 : vector<1x16x16xf32> to vector<16x16xf32>
    %cst_19 = arith.constant dense<0.000000e+00> : vector<16x128xf32>
    %26 = tpu.matmul %25, %23, %cst_19 {dimension_numbers = #tpu.dot_dimension_numbers<[1], [0], [0], [1], [0, 0, 1, 1], [], []>} : vector<16x16xf32>, vector<16x128xf32>, vector<16x128xf32> -> vector<16x128xf32>
    %c1_20 = arith.constant 1 : index
    %c0_21 = arith.constant 0 : index
    %c0_22 = arith.constant 0 : index
    %27 = vector.load %arg5[%c1_20, %c0_21, %c0_22] : memref<15x16x1xf32, #tpu.memory_space<vmem>>, vector<1x16x1xf32>
    %28 = vector.shape_cast %27 : vector<1x16x1xf32> to vector<16x1xf32>
    %29 = vector.broadcast %28 : vector<16x1xf32> to vector<16x128xf32>
    %30 = arith.addf %26, %29 : vector<16x128xf32>
    %cst_23 = arith.constant 0.00999999977 : f32
    %31 = vector.broadcast %cst_23 : f32 to vector<16x128xf32>
    %32 = arith.mulf %31, %30 : vector<16x128xf32>
    %33 = arith.maximumf %30, %32 : vector<16x128xf32>
    %c2 = arith.constant 2 : index
    %c0_24 = arith.constant 0 : index
    %c0_25 = arith.constant 0 : index
    %34 = vector.load %arg4[%c2, %c0_24, %c0_25] : memref<15x16x16xf32, #tpu.memory_space<vmem>>, vector<1x16x16xf32>
    %35 = vector.shape_cast %34 : vector<1x16x16xf32> to vector<16x16xf32>
    %cst_26 = arith.constant dense<0.000000e+00> : vector<16x128xf32>
    %36 = tpu.matmul %35, %33, %cst_26 {dimension_numbers = #tpu.dot_dimension_numbers<[1], [0], [0], [1], [0, 0, 1, 1], [], []>} : vector<16x16xf32>, vector<16x128xf32>, vector<16x128xf32> -> vector<16x128xf32>
    %c2_27 = arith.constant 2 : index
    %c0_28 = arith.constant 0 : index
    %c0_29 = arith.constant 0 : index
    %37 = vector.load %arg5[%c2_27, %c0_28, %c0_29] : memref<15x16x1xf32, #tpu.memory_space<vmem>>, vector<1x16x1xf32>
    %38 = vector.shape_cast %37 : vector<1x16x1xf32> to vector<16x1xf32>
    %39 = vector.broadcast %38 : vector<16x1xf32> to vector<16x128xf32>
    %40 = arith.addf %36, %39 : vector<16x128xf32>
    %cst_30 = arith.constant 0.00999999977 : f32
    %41 = vector.broadcast %cst_30 : f32 to vector<16x128xf32>
    %42 = arith.mulf %41, %40 : vector<16x128xf32>
    %43 = arith.maximumf %40, %42 : vector<16x128xf32>
    %c0_31 = arith.constant 0 : index
    %c0_32 = arith.constant 0 : index
    %c0_33 = arith.constant 0 : index
    %44 = vector.load %arg6[%c0_31, %c0_32, %c0_33] : memref<5x2x16xf32, #tpu.memory_space<vmem>>, vector<1x2x16xf32>
    %45 = vector.shape_cast %44 : vector<1x2x16xf32> to vector<2x16xf32>
    %cst_34 = arith.constant dense<0.000000e+00> : vector<2x128xf32>
    %46 = tpu.matmul %45, %43, %cst_34 {dimension_numbers = #tpu.dot_dimension_numbers<[1], [0], [0], [1], [0, 0, 1, 1], [], []>} : vector<2x16xf32>, vector<16x128xf32>, vector<2x128xf32> -> vector<2x128xf32>
    %c0_35 = arith.constant 0 : index
    %c0_36 = arith.constant 0 : index
    %c0_37 = arith.constant 0 : index
    %47 = vector.load %arg7[%c0_35, %c0_36, %c0_37] : memref<5x2x1xf32, #tpu.memory_space<vmem>>, vector<1x2x1xf32>
    %48 = vector.shape_cast %47 : vector<1x2x1xf32> to vector<2x1xf32>
    %49 = vector.broadcast %48 : vector<2x1xf32> to vector<2x128xf32>
    %50 = arith.addf %46, %49 : vector<2x128xf32>
    %51 = vector.extract_strided_slice %50 {offsets = [0, 0], sizes = [1, 128], strides = [1, 1]} : vector<2x128xf32> to vector<1x128xf32>
    %52 = math.exp %51 : vector<1x128xf32>
    %53 = arith.mulf %1, %52 : vector<1x128xf32>
    %54 = vector.extract_strided_slice %50 {offsets = [1, 0], sizes = [1, 128], strides = [1, 1]} : vector<2x128xf32> to vector<1x128xf32>
    %55 = arith.addf %53, %54 : vector<1x128xf32>
    %c1_38 = arith.constant 1 : index
    %c0_39 = arith.constant 0 : index
    %c0_40 = arith.constant 0 : index
    %56 = vector.load %arg2[%c1_38, %c0_39, %c0_40] : memref<5x16x1xf32, #tpu.memory_space<vmem>>, vector<1x16x1xf32>
    %57 = vector.shape_cast %56 : vector<1x16x1xf32> to vector<16x1xf32>
    %58 = vector.broadcast %57 : vector<16x1xf32> to vector<16x128xf32>
    %59 = vector.broadcast %55 : vector<1x128xf32> to vector<16x128xf32>
    %60 = arith.mulf %58, %59 : vector<16x128xf32>
    %c1_41 = arith.constant 1 : index
    %c0_42 = arith.constant 0 : index
    %c0_43 = arith.constant 0 : index
    %61 = vector.load %arg3[%c1_41, %c0_42, %c0_43] : memref<5x16x1xf32, #tpu.memory_space<vmem>>, vector<1x16x1xf32>
    %62 = vector.shape_cast %61 : vector<1x16x1xf32> to vector<16x1xf32>
    %63 = vector.broadcast %62 : vector<16x1xf32> to vector<16x128xf32>
    %64 = arith.addf %60, %63 : vector<16x128xf32>
    %cst_44 = arith.constant 0.00999999977 : f32
    %65 = vector.broadcast %cst_44 : f32 to vector<16x128xf32>
    %66 = arith.mulf %65, %64 : vector<16x128xf32>
    %67 = arith.maximumf %64, %66 : vector<16x128xf32>
    %c3 = arith.constant 3 : index
    %c0_45 = arith.constant 0 : index
    %c0_46 = arith.constant 0 : index
    %68 = vector.load %arg4[%c3, %c0_45, %c0_46] : memref<15x16x16xf32, #tpu.memory_space<vmem>>, vector<1x16x16xf32>
    %69 = vector.shape_cast %68 : vector<1x16x16xf32> to vector<16x16xf32>
    %cst_47 = arith.constant dense<0.000000e+00> : vector<16x128xf32>
    %70 = tpu.matmul %69, %67, %cst_47 {dimension_numbers = #tpu.dot_dimension_numbers<[1], [0], [0], [1], [0, 0, 1, 1], [], []>} : vector<16x16xf32>, vector<16x128xf32>, vector<16x128xf32> -> vector<16x128xf32>
    %c3_48 = arith.constant 3 : index
    %c0_49 = arith.constant 0 : index
    %c0_50 = arith.constant 0 : index
    %71 = vector.load %arg5[%c3_48, %c0_49, %c0_50] : memref<15x16x1xf32, #tpu.memory_space<vmem>>, vector<1x16x1xf32>
    %72 = vector.shape_cast %71 : vector<1x16x1xf32> to vector<16x1xf32>
    %73 = vector.broadcast %72 : vector<16x1xf32> to vector<16x128xf32>
    %74 = arith.addf %70, %73 : vector<16x128xf32>
    %cst_51 = arith.constant 0.00999999977 : f32
    %75 = vector.broadcast %cst_51 : f32 to vector<16x128xf32>
    %76 = arith.mulf %75, %74 : vector<16x128xf32>
    %77 = arith.maximumf %74, %76 : vector<16x128xf32>
    %c4 = arith.constant 4 : index
    %c0_52 = arith.constant 0 : index
    %c0_53 = arith.constant 0 : index
    %78 = vector.load %arg4[%c4, %c0_52, %c0_53] : memref<15x16x16xf32, #tpu.memory_space<vmem>>, vector<1x16x16xf32>
    %79 = vector.shape_cast %78 : vector<1x16x16xf32> to vector<16x16xf32>
    %cst_54 = arith.constant dense<0.000000e+00> : vector<16x128xf32>
    %80 = tpu.matmul %79, %77, %cst_54 {dimension_numbers = #tpu.dot_dimension_numbers<[1], [0], [0], [1], [0, 0, 1, 1], [], []>} : vector<16x16xf32>, vector<16x128xf32>, vector<16x128xf32> -> vector<16x128xf32>
    %c4_55 = arith.constant 4 : index
    %c0_56 = arith.constant 0 : index
    %c0_57 = arith.constant 0 : index
    %81 = vector.load %arg5[%c4_55, %c0_56, %c0_57] : memref<15x16x1xf32, #tpu.memory_space<vmem>>, vector<1x16x1xf32>
    %82 = vector.shape_cast %81 : vector<1x16x1xf32> to vector<16x1xf32>
    %83 = vector.broadcast %82 : vector<16x1xf32> to vector<16x128xf32>
    %84 = arith.addf %80, %83 : vector<16x128xf32>
    %cst_58 = arith.constant 0.00999999977 : f32
    %85 = vector.broadcast %cst_58 : f32 to vector<16x128xf32>
    %86 = arith.mulf %85, %84 : vector<16x128xf32>
    %87 = arith.maximumf %84, %86 : vector<16x128xf32>
    %c5 = arith.constant 5 : index
    %c0_59 = arith.constant 0 : index
    %c0_60 = arith.constant 0 : index
    %88 = vector.load %arg4[%c5, %c0_59, %c0_60] : memref<15x16x16xf32, #tpu.memory_space<vmem>>, vector<1x16x16xf32>
    %89 = vector.shape_cast %88 : vector<1x16x16xf32> to vector<16x16xf32>
    %cst_61 = arith.constant dense<0.000000e+00> : vector<16x128xf32>
    %90 = tpu.matmul %89, %87, %cst_61 {dimension_numbers = #tpu.dot_dimension_numbers<[1], [0], [0], [1], [0, 0, 1, 1], [], []>} : vector<16x16xf32>, vector<16x128xf32>, vector<16x128xf32> -> vector<16x128xf32>
    %c5_62 = arith.constant 5 : index
    %c0_63 = arith.constant 0 : index
    %c0_64 = arith.constant 0 : index
    %91 = vector.load %arg5[%c5_62, %c0_63, %c0_64] : memref<15x16x1xf32, #tpu.memory_space<vmem>>, vector<1x16x1xf32>
    %92 = vector.shape_cast %91 : vector<1x16x1xf32> to vector<16x1xf32>
    %93 = vector.broadcast %92 : vector<16x1xf32> to vector<16x128xf32>
    %94 = arith.addf %90, %93 : vector<16x128xf32>
    %cst_65 = arith.constant 0.00999999977 : f32
    %95 = vector.broadcast %cst_65 : f32 to vector<16x128xf32>
    %96 = arith.mulf %95, %94 : vector<16x128xf32>
    %97 = arith.maximumf %94, %96 : vector<16x128xf32>
    %c1_66 = arith.constant 1 : index
    %c0_67 = arith.constant 0 : index
    %c0_68 = arith.constant 0 : index
    %98 = vector.load %arg6[%c1_66, %c0_67, %c0_68] : memref<5x2x16xf32, #tpu.memory_space<vmem>>, vector<1x2x16xf32>
    %99 = vector.shape_cast %98 : vector<1x2x16xf32> to vector<2x16xf32>
    %cst_69 = arith.constant dense<0.000000e+00> : vector<2x128xf32>
    %100 = tpu.matmul %99, %97, %cst_69 {dimension_numbers = #tpu.dot_dimension_numbers<[1], [0], [0], [1], [0, 0, 1, 1], [], []>} : vector<2x16xf32>, vector<16x128xf32>, vector<2x128xf32> -> vector<2x128xf32>
    %c1_70 = arith.constant 1 : index
    %c0_71 = arith.constant 0 : index
    %c0_72 = arith.constant 0 : index
    %101 = vector.load %arg7[%c1_70, %c0_71, %c0_72] : memref<5x2x1xf32, #tpu.memory_space<vmem>>, vector<1x2x1xf32>
    %102 = vector.shape_cast %101 : vector<1x2x1xf32> to vector<2x1xf32>
    %103 = vector.broadcast %102 : vector<2x1xf32> to vector<2x128xf32>
    %104 = arith.addf %100, %103 : vector<2x128xf32>
    %105 = vector.extract_strided_slice %104 {offsets = [0, 0], sizes = [1, 128], strides = [1, 1]} : vector<2x128xf32> to vector<1x128xf32>
    %106 = math.exp %105 : vector<1x128xf32>
    %107 = arith.mulf %0, %106 : vector<1x128xf32>
    %108 = vector.extract_strided_slice %104 {offsets = [1, 0], sizes = [1, 128], strides = [1, 1]} : vector<2x128xf32> to vector<1x128xf32>
    %109 = arith.addf %107, %108 : vector<1x128xf32>
    %c2_73 = arith.constant 2 : index
    %c0_74 = arith.constant 0 : index
    %c0_75 = arith.constant 0 : index
    %110 = vector.load %arg2[%c2_73, %c0_74, %c0_75] : memref<5x16x1xf32, #tpu.memory_space<vmem>>, vector<1x16x1xf32>
    %111 = vector.shape_cast %110 : vector<1x16x1xf32> to vector<16x1xf32>
    %112 = vector.broadcast %111 : vector<16x1xf32> to vector<16x128xf32>
    %113 = vector.broadcast %109 : vector<1x128xf32> to vector<16x128xf32>
    %114 = arith.mulf %112, %113 : vector<16x128xf32>
    %c2_76 = arith.constant 2 : index
    %c0_77 = arith.constant 0 : index
    %c0_78 = arith.constant 0 : index
    %115 = vector.load %arg3[%c2_76, %c0_77, %c0_78] : memref<5x16x1xf32, #tpu.memory_space<vmem>>, vector<1x16x1xf32>
    %116 = vector.shape_cast %115 : vector<1x16x1xf32> to vector<16x1xf32>
    %117 = vector.broadcast %116 : vector<16x1xf32> to vector<16x128xf32>
    %118 = arith.addf %114, %117 : vector<16x128xf32>
    %cst_79 = arith.constant 0.00999999977 : f32
    %119 = vector.broadcast %cst_79 : f32 to vector<16x128xf32>
    %120 = arith.mulf %119, %118 : vector<16x128xf32>
    %121 = arith.maximumf %118, %120 : vector<16x128xf32>
    %c6 = arith.constant 6 : index
    %c0_80 = arith.constant 0 : index
    %c0_81 = arith.constant 0 : index
    %122 = vector.load %arg4[%c6, %c0_80, %c0_81] : memref<15x16x16xf32, #tpu.memory_space<vmem>>, vector<1x16x16xf32>
    %123 = vector.shape_cast %122 : vector<1x16x16xf32> to vector<16x16xf32>
    %cst_82 = arith.constant dense<0.000000e+00> : vector<16x128xf32>
    %124 = tpu.matmul %123, %121, %cst_82 {dimension_numbers = #tpu.dot_dimension_numbers<[1], [0], [0], [1], [0, 0, 1, 1], [], []>} : vector<16x16xf32>, vector<16x128xf32>, vector<16x128xf32> -> vector<16x128xf32>
    %c6_83 = arith.constant 6 : index
    %c0_84 = arith.constant 0 : index
    %c0_85 = arith.constant 0 : index
    %125 = vector.load %arg5[%c6_83, %c0_84, %c0_85] : memref<15x16x1xf32, #tpu.memory_space<vmem>>, vector<1x16x1xf32>
    %126 = vector.shape_cast %125 : vector<1x16x1xf32> to vector<16x1xf32>
    %127 = vector.broadcast %126 : vector<16x1xf32> to vector<16x128xf32>
    %128 = arith.addf %124, %127 : vector<16x128xf32>
    %cst_86 = arith.constant 0.00999999977 : f32
    %129 = vector.broadcast %cst_86 : f32 to vector<16x128xf32>
    %130 = arith.mulf %129, %128 : vector<16x128xf32>
    %131 = arith.maximumf %128, %130 : vector<16x128xf32>
    %c7 = arith.constant 7 : index
    %c0_87 = arith.constant 0 : index
    %c0_88 = arith.constant 0 : index
    %132 = vector.load %arg4[%c7, %c0_87, %c0_88] : memref<15x16x16xf32, #tpu.memory_space<vmem>>, vector<1x16x16xf32>
    %133 = vector.shape_cast %132 : vector<1x16x16xf32> to vector<16x16xf32>
    %cst_89 = arith.constant dense<0.000000e+00> : vector<16x128xf32>
    %134 = tpu.matmul %133, %131, %cst_89 {dimension_numbers = #tpu.dot_dimension_numbers<[1], [0], [0], [1], [0, 0, 1, 1], [], []>} : vector<16x16xf32>, vector<16x128xf32>, vector<16x128xf32> -> vector<16x128xf32>
    %c7_90 = arith.constant 7 : index
    %c0_91 = arith.constant 0 : index
    %c0_92 = arith.constant 0 : index
    %135 = vector.load %arg5[%c7_90, %c0_91, %c0_92] : memref<15x16x1xf32, #tpu.memory_space<vmem>>, vector<1x16x1xf32>
    %136 = vector.shape_cast %135 : vector<1x16x1xf32> to vector<16x1xf32>
    %137 = vector.broadcast %136 : vector<16x1xf32> to vector<16x128xf32>
    %138 = arith.addf %134, %137 : vector<16x128xf32>
    %cst_93 = arith.constant 0.00999999977 : f32
    %139 = vector.broadcast %cst_93 : f32 to vector<16x128xf32>
    %140 = arith.mulf %139, %138 : vector<16x128xf32>
    %141 = arith.maximumf %138, %140 : vector<16x128xf32>
    %c8 = arith.constant 8 : index
    %c0_94 = arith.constant 0 : index
    %c0_95 = arith.constant 0 : index
    %142 = vector.load %arg4[%c8, %c0_94, %c0_95] : memref<15x16x16xf32, #tpu.memory_space<vmem>>, vector<1x16x16xf32>
    %143 = vector.shape_cast %142 : vector<1x16x16xf32> to vector<16x16xf32>
    %cst_96 = arith.constant dense<0.000000e+00> : vector<16x128xf32>
    %144 = tpu.matmul %143, %141, %cst_96 {dimension_numbers = #tpu.dot_dimension_numbers<[1], [0], [0], [1], [0, 0, 1, 1], [], []>} : vector<16x16xf32>, vector<16x128xf32>, vector<16x128xf32> -> vector<16x128xf32>
    %c8_97 = arith.constant 8 : index
    %c0_98 = arith.constant 0 : index
    %c0_99 = arith.constant 0 : index
    %145 = vector.load %arg5[%c8_97, %c0_98, %c0_99] : memref<15x16x1xf32, #tpu.memory_space<vmem>>, vector<1x16x1xf32>
    %146 = vector.shape_cast %145 : vector<1x16x1xf32> to vector<16x1xf32>
    %147 = vector.broadcast %146 : vector<16x1xf32> to vector<16x128xf32>
    %148 = arith.addf %144, %147 : vector<16x128xf32>
    %cst_100 = arith.constant 0.00999999977 : f32
    %149 = vector.broadcast %cst_100 : f32 to vector<16x128xf32>
    %150 = arith.mulf %149, %148 : vector<16x128xf32>
    %151 = arith.maximumf %148, %150 : vector<16x128xf32>
    %c2_101 = arith.constant 2 : index
    %c0_102 = arith.constant 0 : index
    %c0_103 = arith.constant 0 : index
    %152 = vector.load %arg6[%c2_101, %c0_102, %c0_103] : memref<5x2x16xf32, #tpu.memory_space<vmem>>, vector<1x2x16xf32>
    %153 = vector.shape_cast %152 : vector<1x2x16xf32> to vector<2x16xf32>
    %cst_104 = arith.constant dense<0.000000e+00> : vector<2x128xf32>
    %154 = tpu.matmul %153, %151, %cst_104 {dimension_numbers = #tpu.dot_dimension_numbers<[1], [0], [0], [1], [0, 0, 1, 1], [], []>} : vector<2x16xf32>, vector<16x128xf32>, vector<2x128xf32> -> vector<2x128xf32>
    %c2_105 = arith.constant 2 : index
    %c0_106 = arith.constant 0 : index
    %c0_107 = arith.constant 0 : index
    %155 = vector.load %arg7[%c2_105, %c0_106, %c0_107] : memref<5x2x1xf32, #tpu.memory_space<vmem>>, vector<1x2x1xf32>
    %156 = vector.shape_cast %155 : vector<1x2x1xf32> to vector<2x1xf32>
    %157 = vector.broadcast %156 : vector<2x1xf32> to vector<2x128xf32>
    %158 = arith.addf %154, %157 : vector<2x128xf32>
    %159 = vector.extract_strided_slice %158 {offsets = [0, 0], sizes = [1, 128], strides = [1, 1]} : vector<2x128xf32> to vector<1x128xf32>
    %160 = math.exp %159 : vector<1x128xf32>
    %161 = arith.mulf %55, %160 : vector<1x128xf32>
    %162 = vector.extract_strided_slice %158 {offsets = [1, 0], sizes = [1, 128], strides = [1, 1]} : vector<2x128xf32> to vector<1x128xf32>
    %163 = arith.addf %161, %162 : vector<1x128xf32>
    %c3_108 = arith.constant 3 : index
    %c0_109 = arith.constant 0 : index
    %c0_110 = arith.constant 0 : index
    %164 = vector.load %arg2[%c3_108, %c0_109, %c0_110] : memref<5x16x1xf32, #tpu.memory_space<vmem>>, vector<1x16x1xf32>
    %165 = vector.shape_cast %164 : vector<1x16x1xf32> to vector<16x1xf32>
    %166 = vector.broadcast %165 : vector<16x1xf32> to vector<16x128xf32>
    %167 = vector.broadcast %163 : vector<1x128xf32> to vector<16x128xf32>
    %168 = arith.mulf %166, %167 : vector<16x128xf32>
    %c3_111 = arith.constant 3 : index
    %c0_112 = arith.constant 0 : index
    %c0_113 = arith.constant 0 : index
    %169 = vector.load %arg3[%c3_111, %c0_112, %c0_113] : memref<5x16x1xf32, #tpu.memory_space<vmem>>, vector<1x16x1xf32>
    %170 = vector.shape_cast %169 : vector<1x16x1xf32> to vector<16x1xf32>
    %171 = vector.broadcast %170 : vector<16x1xf32> to vector<16x128xf32>
    %172 = arith.addf %168, %171 : vector<16x128xf32>
    %cst_114 = arith.constant 0.00999999977 : f32
    %173 = vector.broadcast %cst_114 : f32 to vector<16x128xf32>
    %174 = arith.mulf %173, %172 : vector<16x128xf32>
    %175 = arith.maximumf %172, %174 : vector<16x128xf32>
    %c9 = arith.constant 9 : index
    %c0_115 = arith.constant 0 : index
    %c0_116 = arith.constant 0 : index
    %176 = vector.load %arg4[%c9, %c0_115, %c0_116] : memref<15x16x16xf32, #tpu.memory_space<vmem>>, vector<1x16x16xf32>
    %177 = vector.shape_cast %176 : vector<1x16x16xf32> to vector<16x16xf32>
    %cst_117 = arith.constant dense<0.000000e+00> : vector<16x128xf32>
    %178 = tpu.matmul %177, %175, %cst_117 {dimension_numbers = #tpu.dot_dimension_numbers<[1], [0], [0], [1], [0, 0, 1, 1], [], []>} : vector<16x16xf32>, vector<16x128xf32>, vector<16x128xf32> -> vector<16x128xf32>
    %c9_118 = arith.constant 9 : index
    %c0_119 = arith.constant 0 : index
    %c0_120 = arith.constant 0 : index
    %179 = vector.load %arg5[%c9_118, %c0_119, %c0_120] : memref<15x16x1xf32, #tpu.memory_space<vmem>>, vector<1x16x1xf32>
    %180 = vector.shape_cast %179 : vector<1x16x1xf32> to vector<16x1xf32>
    %181 = vector.broadcast %180 : vector<16x1xf32> to vector<16x128xf32>
    %182 = arith.addf %178, %181 : vector<16x128xf32>
    %cst_121 = arith.constant 0.00999999977 : f32
    %183 = vector.broadcast %cst_121 : f32 to vector<16x128xf32>
    %184 = arith.mulf %183, %182 : vector<16x128xf32>
    %185 = arith.maximumf %182, %184 : vector<16x128xf32>
    %c10 = arith.constant 10 : index
    %c0_122 = arith.constant 0 : index
    %c0_123 = arith.constant 0 : index
    %186 = vector.load %arg4[%c10, %c0_122, %c0_123] : memref<15x16x16xf32, #tpu.memory_space<vmem>>, vector<1x16x16xf32>
    %187 = vector.shape_cast %186 : vector<1x16x16xf32> to vector<16x16xf32>
    %cst_124 = arith.constant dense<0.000000e+00> : vector<16x128xf32>
    %188 = tpu.matmul %187, %185, %cst_124 {dimension_numbers = #tpu.dot_dimension_numbers<[1], [0], [0], [1], [0, 0, 1, 1], [], []>} : vector<16x16xf32>, vector<16x128xf32>, vector<16x128xf32> -> vector<16x128xf32>
    %c10_125 = arith.constant 10 : index
    %c0_126 = arith.constant 0 : index
    %c0_127 = arith.constant 0 : index
    %189 = vector.load %arg5[%c10_125, %c0_126, %c0_127] : memref<15x16x1xf32, #tpu.memory_space<vmem>>, vector<1x16x1xf32>
    %190 = vector.shape_cast %189 : vector<1x16x1xf32> to vector<16x1xf32>
    %191 = vector.broadcast %190 : vector<16x1xf32> to vector<16x128xf32>
    %192 = arith.addf %188, %191 : vector<16x128xf32>
    %cst_128 = arith.constant 0.00999999977 : f32
    %193 = vector.broadcast %cst_128 : f32 to vector<16x128xf32>
    %194 = arith.mulf %193, %192 : vector<16x128xf32>
    %195 = arith.maximumf %192, %194 : vector<16x128xf32>
    %c11 = arith.constant 11 : index
    %c0_129 = arith.constant 0 : index
    %c0_130 = arith.constant 0 : index
    %196 = vector.load %arg4[%c11, %c0_129, %c0_130] : memref<15x16x16xf32, #tpu.memory_space<vmem>>, vector<1x16x16xf32>
    %197 = vector.shape_cast %196 : vector<1x16x16xf32> to vector<16x16xf32>
    %cst_131 = arith.constant dense<0.000000e+00> : vector<16x128xf32>
    %198 = tpu.matmul %197, %195, %cst_131 {dimension_numbers = #tpu.dot_dimension_numbers<[1], [0], [0], [1], [0, 0, 1, 1], [], []>} : vector<16x16xf32>, vector<16x128xf32>, vector<16x128xf32> -> vector<16x128xf32>
    %c11_132 = arith.constant 11 : index
    %c0_133 = arith.constant 0 : index
    %c0_134 = arith.constant 0 : index
    %199 = vector.load %arg5[%c11_132, %c0_133, %c0_134] : memref<15x16x1xf32, #tpu.memory_space<vmem>>, vector<1x16x1xf32>
    %200 = vector.shape_cast %199 : vector<1x16x1xf32> to vector<16x1xf32>
    %201 = vector.broadcast %200 : vector<16x1xf32> to vector<16x128xf32>
    %202 = arith.addf %198, %201 : vector<16x128xf32>
    %cst_135 = arith.constant 0.00999999977 : f32
    %203 = vector.broadcast %cst_135 : f32 to vector<16x128xf32>
    %204 = arith.mulf %203, %202 : vector<16x128xf32>
    %205 = arith.maximumf %202, %204 : vector<16x128xf32>
    %c3_136 = arith.constant 3 : index
    %c0_137 = arith.constant 0 : index
    %c0_138 = arith.constant 0 : index
    %206 = vector.load %arg6[%c3_136, %c0_137, %c0_138] : memref<5x2x16xf32, #tpu.memory_space<vmem>>, vector<1x2x16xf32>
    %207 = vector.shape_cast %206 : vector<1x2x16xf32> to vector<2x16xf32>
    %cst_139 = arith.constant dense<0.000000e+00> : vector<2x128xf32>
    %208 = tpu.matmul %207, %205, %cst_139 {dimension_numbers = #tpu.dot_dimension_numbers<[1], [0], [0], [1], [0, 0, 1, 1], [], []>} : vector<2x16xf32>, vector<16x128xf32>, vector<2x128xf32> -> vector<2x128xf32>
    %c3_140 = arith.constant 3 : index
    %c0_141 = arith.constant 0 : index
    %c0_142 = arith.constant 0 : index
    %209 = vector.load %arg7[%c3_140, %c0_141, %c0_142] : memref<5x2x1xf32, #tpu.memory_space<vmem>>, vector<1x2x1xf32>
    %210 = vector.shape_cast %209 : vector<1x2x1xf32> to vector<2x1xf32>
    %211 = vector.broadcast %210 : vector<2x1xf32> to vector<2x128xf32>
    %212 = arith.addf %208, %211 : vector<2x128xf32>
    %213 = vector.extract_strided_slice %212 {offsets = [0, 0], sizes = [1, 128], strides = [1, 1]} : vector<2x128xf32> to vector<1x128xf32>
    %214 = math.exp %213 : vector<1x128xf32>
    %215 = arith.mulf %109, %214 : vector<1x128xf32>
    %216 = vector.extract_strided_slice %212 {offsets = [1, 0], sizes = [1, 128], strides = [1, 1]} : vector<2x128xf32> to vector<1x128xf32>
    %217 = arith.addf %215, %216 : vector<1x128xf32>
    %c4_143 = arith.constant 4 : index
    %c0_144 = arith.constant 0 : index
    %c0_145 = arith.constant 0 : index
    %218 = vector.load %arg2[%c4_143, %c0_144, %c0_145] : memref<5x16x1xf32, #tpu.memory_space<vmem>>, vector<1x16x1xf32>
    %219 = vector.shape_cast %218 : vector<1x16x1xf32> to vector<16x1xf32>
    %220 = vector.broadcast %219 : vector<16x1xf32> to vector<16x128xf32>
    %221 = vector.broadcast %217 : vector<1x128xf32> to vector<16x128xf32>
    %222 = arith.mulf %220, %221 : vector<16x128xf32>
    %c4_146 = arith.constant 4 : index
    %c0_147 = arith.constant 0 : index
    %c0_148 = arith.constant 0 : index
    %223 = vector.load %arg3[%c4_146, %c0_147, %c0_148] : memref<5x16x1xf32, #tpu.memory_space<vmem>>, vector<1x16x1xf32>
    %224 = vector.shape_cast %223 : vector<1x16x1xf32> to vector<16x1xf32>
    %225 = vector.broadcast %224 : vector<16x1xf32> to vector<16x128xf32>
    %226 = arith.addf %222, %225 : vector<16x128xf32>
    %cst_149 = arith.constant 0.00999999977 : f32
    %227 = vector.broadcast %cst_149 : f32 to vector<16x128xf32>
    %228 = arith.mulf %227, %226 : vector<16x128xf32>
    %229 = arith.maximumf %226, %228 : vector<16x128xf32>
    %c12 = arith.constant 12 : index
    %c0_150 = arith.constant 0 : index
    %c0_151 = arith.constant 0 : index
    %230 = vector.load %arg4[%c12, %c0_150, %c0_151] : memref<15x16x16xf32, #tpu.memory_space<vmem>>, vector<1x16x16xf32>
    %231 = vector.shape_cast %230 : vector<1x16x16xf32> to vector<16x16xf32>
    %cst_152 = arith.constant dense<0.000000e+00> : vector<16x128xf32>
    %232 = tpu.matmul %231, %229, %cst_152 {dimension_numbers = #tpu.dot_dimension_numbers<[1], [0], [0], [1], [0, 0, 1, 1], [], []>} : vector<16x16xf32>, vector<16x128xf32>, vector<16x128xf32> -> vector<16x128xf32>
    %c12_153 = arith.constant 12 : index
    %c0_154 = arith.constant 0 : index
    %c0_155 = arith.constant 0 : index
    %233 = vector.load %arg5[%c12_153, %c0_154, %c0_155] : memref<15x16x1xf32, #tpu.memory_space<vmem>>, vector<1x16x1xf32>
    %234 = vector.shape_cast %233 : vector<1x16x1xf32> to vector<16x1xf32>
    %235 = vector.broadcast %234 : vector<16x1xf32> to vector<16x128xf32>
    %236 = arith.addf %232, %235 : vector<16x128xf32>
    %cst_156 = arith.constant 0.00999999977 : f32
    %237 = vector.broadcast %cst_156 : f32 to vector<16x128xf32>
    %238 = arith.mulf %237, %236 : vector<16x128xf32>
    %239 = arith.maximumf %236, %238 : vector<16x128xf32>
    %c13 = arith.constant 13 : index
    %c0_157 = arith.constant 0 : index
    %c0_158 = arith.constant 0 : index
    %240 = vector.load %arg4[%c13, %c0_157, %c0_158] : memref<15x16x16xf32, #tpu.memory_space<vmem>>, vector<1x16x16xf32>
    %241 = vector.shape_cast %240 : vector<1x16x16xf32> to vector<16x16xf32>
    %cst_159 = arith.constant dense<0.000000e+00> : vector<16x128xf32>
    %242 = tpu.matmul %241, %239, %cst_159 {dimension_numbers = #tpu.dot_dimension_numbers<[1], [0], [0], [1], [0, 0, 1, 1], [], []>} : vector<16x16xf32>, vector<16x128xf32>, vector<16x128xf32> -> vector<16x128xf32>
    %c13_160 = arith.constant 13 : index
    %c0_161 = arith.constant 0 : index
    %c0_162 = arith.constant 0 : index
    %243 = vector.load %arg5[%c13_160, %c0_161, %c0_162] : memref<15x16x1xf32, #tpu.memory_space<vmem>>, vector<1x16x1xf32>
    %244 = vector.shape_cast %243 : vector<1x16x1xf32> to vector<16x1xf32>
    %245 = vector.broadcast %244 : vector<16x1xf32> to vector<16x128xf32>
    %246 = arith.addf %242, %245 : vector<16x128xf32>
    %cst_163 = arith.constant 0.00999999977 : f32
    %247 = vector.broadcast %cst_163 : f32 to vector<16x128xf32>
    %248 = arith.mulf %247, %246 : vector<16x128xf32>
    %249 = arith.maximumf %246, %248 : vector<16x128xf32>
    %c14 = arith.constant 14 : index
    %c0_164 = arith.constant 0 : index
    %c0_165 = arith.constant 0 : index
    %250 = vector.load %arg4[%c14, %c0_164, %c0_165] : memref<15x16x16xf32, #tpu.memory_space<vmem>>, vector<1x16x16xf32>
    %251 = vector.shape_cast %250 : vector<1x16x16xf32> to vector<16x16xf32>
    %cst_166 = arith.constant dense<0.000000e+00> : vector<16x128xf32>
    %252 = tpu.matmul %251, %249, %cst_166 {dimension_numbers = #tpu.dot_dimension_numbers<[1], [0], [0], [1], [0, 0, 1, 1], [], []>} : vector<16x16xf32>, vector<16x128xf32>, vector<16x128xf32> -> vector<16x128xf32>
    %c14_167 = arith.constant 14 : index
    %c0_168 = arith.constant 0 : index
    %c0_169 = arith.constant 0 : index
    %253 = vector.load %arg5[%c14_167, %c0_168, %c0_169] : memref<15x16x1xf32, #tpu.memory_space<vmem>>, vector<1x16x1xf32>
    %254 = vector.shape_cast %253 : vector<1x16x1xf32> to vector<16x1xf32>
    %255 = vector.broadcast %254 : vector<16x1xf32> to vector<16x128xf32>
    %256 = arith.addf %252, %255 : vector<16x128xf32>
    %cst_170 = arith.constant 0.00999999977 : f32
    %257 = vector.broadcast %cst_170 : f32 to vector<16x128xf32>
    %258 = arith.mulf %257, %256 : vector<16x128xf32>
    %259 = arith.maximumf %256, %258 : vector<16x128xf32>
    %c4_171 = arith.constant 4 : index
    %c0_172 = arith.constant 0 : index
    %c0_173 = arith.constant 0 : index
    %260 = vector.load %arg6[%c4_171, %c0_172, %c0_173] : memref<5x2x16xf32, #tpu.memory_space<vmem>>, vector<1x2x16xf32>
    %261 = vector.shape_cast %260 : vector<1x2x16xf32> to vector<2x16xf32>
    %cst_174 = arith.constant dense<0.000000e+00> : vector<2x128xf32>
    %262 = tpu.matmul %261, %259, %cst_174 {dimension_numbers = #tpu.dot_dimension_numbers<[1], [0], [0], [1], [0, 0, 1, 1], [], []>} : vector<2x16xf32>, vector<16x128xf32>, vector<2x128xf32> -> vector<2x128xf32>
    %c4_175 = arith.constant 4 : index
    %c0_176 = arith.constant 0 : index
    %c0_177 = arith.constant 0 : index
    %263 = vector.load %arg7[%c4_175, %c0_176, %c0_177] : memref<5x2x1xf32, #tpu.memory_space<vmem>>, vector<1x2x1xf32>
    %264 = vector.shape_cast %263 : vector<1x2x1xf32> to vector<2x1xf32>
    %265 = vector.broadcast %264 : vector<2x1xf32> to vector<2x128xf32>
    %266 = arith.addf %262, %265 : vector<2x128xf32>
    %267 = vector.extract_strided_slice %266 {offsets = [0, 0], sizes = [1, 128], strides = [1, 1]} : vector<2x128xf32> to vector<1x128xf32>
    %268 = math.exp %267 : vector<1x128xf32>
    %269 = arith.mulf %163, %268 : vector<1x128xf32>
    %270 = vector.extract_strided_slice %266 {offsets = [1, 0], sizes = [1, 128], strides = [1, 1]} : vector<2x128xf32> to vector<1x128xf32>
    %271 = arith.addf %269, %270 : vector<1x128xf32>
    %c0_178 = arith.constant 0 : index
    %c0_179 = arith.constant 0 : index
    %272 = vector.load %arg8[%c0_178, %c0_179] : memref<2x128xf32, #tpu.memory_space<vmem>>, vector<1x128xf32>
    tpu.vector_store %arg8[%c0_178, %c0_179], %217 {strides = array<i32>} : memref<2x128xf32, #tpu.memory_space<vmem>>, vector<1x128xf32>,
    %c1_180 = arith.constant 1 : index
    %c0_181 = arith.constant 0 : index
    %273 = vector.load %arg8[%c1_180, %c0_181] : memref<2x128xf32, #tpu.memory_space<vmem>>, vector<1x128xf32>
    tpu.vector_store %arg8[%c1_180, %c0_181], %271 {strides = array<i32>} : memref<2x128xf32, #tpu.memory_space<vmem>>, vector<1x128xf32>,
    return
  }
  func.func @transform_0(%arg0: i32) -> (i32, i32) {
    %c0_i32 = arith.constant 0 : i32
    %c0_i32_0 = arith.constant 0 : i32
    return %c0_i32, %arg0 : i32, i32
  }
  func.func @transform_1(%arg0: i32) -> (i32, i32, i32) {
    %c0_i32 = arith.constant 0 : i32
    %c0_i32_0 = arith.constant 0 : i32
    %c0_i32_1 = arith.constant 0 : i32
    %c0_i32_2 = arith.constant 0 : i32
    return %c0_i32, %c0_i32_0, %c0_i32_1 : i32, i32, i32
  }
  func.func @transform_2(%arg0: i32) -> (i32, i32, i32) {
    %c0_i32 = arith.constant 0 : i32
    %c0_i32_0 = arith.constant 0 : i32
    %c0_i32_1 = arith.constant 0 : i32
    %c0_i32_2 = arith.constant 0 : i32
    return %c0_i32, %c0_i32_0, %c0_i32_1 : i32, i32, i32
  }
  func.func @transform_3(%arg0: i32) -> (i32, i32, i32) {
    %c0_i32 = arith.constant 0 : i32
    %c0_i32_0 = arith.constant 0 : i32
    %c0_i32_1 = arith.constant 0 : i32
    %c0_i32_2 = arith.constant 0 : i32
    return %c0_i32, %c0_i32_0, %c0_i32_1 : i32, i32, i32
  }
  func.func @transform_4(%arg0: i32) -> (i32, i32, i32) {
    %c0_i32 = arith.constant 0 : i32
    %c0_i32_0 = arith.constant 0 : i32
    %c0_i32_1 = arith.constant 0 : i32
    %c0_i32_2 = arith.constant 0 : i32
    return %c0_i32, %c0_i32_0, %c0_i32_1 : i32, i32, i32
  }
  func.func @transform_5(%arg0: i32) -> (i32, i32, i32) {
    %c0_i32 = arith.constant 0 : i32
    %c0_i32_0 = arith.constant 0 : i32
    %c0_i32_1 = arith.constant 0 : i32
    %c0_i32_2 = arith.constant 0 : i32
    return %c0_i32, %c0_i32_0, %c0_i32_1 : i32, i32, i32
  }
  func.func @transform_6(%arg0: i32) -> (i32, i32, i32) {
    %c0_i32 = arith.constant 0 : i32
    %c0_i32_0 = arith.constant 0 : i32
    %c0_i32_1 = arith.constant 0 : i32
    %c0_i32_2 = arith.constant 0 : i32
    return %c0_i32, %c0_i32_0, %c0_i32_1 : i32, i32, i32
  }
  func.func @transform_7(%arg0: i32) -> (i32, i32) {
    %c0_i32 = arith.constant 0 : i32
    %c0_i32_0 = arith.constant 0 : i32
    return %c0_i32, %arg0 : i32, i32
  }
}

</mosaic_0001>

<llo_original>
// kernel: tpu_custom_call.1
$region0: #{tpu_custom_call.1}
  #allocation0 [shape = 'u32[]', space=smem, size = 0x4, offset = 0x4, fixed_abs, tag = 'smem constant byte address 0x4 - core index']
  #allocation1 [shape = 'u32[144,128]{1,0:T(1,128)}', space=vmem, size = 0x12000, scoped, tag = 'internal scratch']
  %s0 = inlined_call_operand.vmem [shape: f32[2,256], index: 0, kind: input, shape index: {}]
  %s1 = inlined_call_operand.vmem [shape: f32[5,16,1], index: 1, kind: input, shape index: {}]
  %s2 = inlined_call_operand.vmem [shape: f32[5,16,1], index: 2, kind: input, shape index: {}]
  %s3 = inlined_call_operand.vmem [shape: f32[15,16,16], index: 3, kind: input, shape index: {}]
  %s4 = inlined_call_operand.vmem [shape: f32[15,16,1], index: 4, kind: input, shape index: {}]
  %s5 = inlined_call_operand.vmem [shape: f32[5,2,16], index: 5, kind: input, shape index: {}]
  %s6 = inlined_call_operand.vmem [shape: f32[5,2,1], index: 6, kind: input, shape index: {}]
  %s7 = inlined_call_operand.hbm [shape: f32[2,256], index: 7, kind: output, shape index: {}]
  %s8 = sld [smem:[#allocation0]]
  $region61: #{tpu_custom_call.1} parent=0
    _
  %s10 = ssub.s32 1, %s8
  %s11 = scalar_select 0, %s10, %s8
  $region1: #{tpu_custom_call.1} parent=0
    #allocation2 [shape = 'u8[2048]{0}', space=vmem, size = 0x800, scoped, tag = 'output window, operand 0']
    #allocation3 [shape = 's32[2]{0}', space=sflag, size = 0x8, scoped, tag = 'scoped memory for tpu_custom_call.1']
    %12 = vsyncpa [#allocation3], 0
    %s13 = scalar_lea.sflag [#allocation3], 1
    %14 = vsyncpa %s13, 0
    loop: start=0, step=1, limit=4
    $region2: #{tpu_custom_call.1} parent=1 // loop_pre_header
      _
    $region3: #{tpu_custom_call.1} parent=1 // loop_header
      %s16 = sphi 0, %s20
      %p17 = scmp.ge.s32.totalorder %s16, 4
      %s26 = sphi 0, %s28
      %s29 = sphi 0, %s26
      %s30 = sphi 0, %s29
      %s46 = sphi 0, %s30
      %s50 = sphi 0, %s50
      %s52 = sphi 0, %s50
      %s53 = sphi 0, %s52
      %s67 = sphi 0, %s53
      %s71 = sphi 0, %s71
      %s73 = sphi 0, %s71
      %s74 = sphi 0, %s73
      %s88 = sphi 0, %s74
      %s92 = sphi 0, %s92
      %s94 = sphi 0, %s92
      %s95 = sphi 0, %s94
      %s109 = sphi 0, %s95
      %s113 = sphi 0, %s113
      %s115 = sphi 0, %s113
      %s116 = sphi 0, %s115
      %s130 = sphi 0, %s116
      %s134 = sphi 0, %s134
      %s136 = sphi 0, %s134
      %s137 = sphi 0, %s136
      %s151 = sphi 0, %s137
      %s155 = sphi 0, %s155
      %s157 = sphi 0, %s155
      %s158 = sphi 0, %s157
      %s172 = sphi 0, %s158
      %s178 = sphi 0, %s180
      %s181 = sphi 0, %s178
      %s182 = sphi 0, %s181
      %s198 = sphi 0, %s182
    $region4: #{tpu_custom_call.1} parent=1 // loop_header_branch
      %19 = sbr.rel (%p17) target = $region8
    $region5: #{tpu_custom_call.1} parent=1 // loop_body
      %s21 = ssub.s32 %s16, 1
      %s22 = ssub.s32 %s16, 2
      %s23 = sadd.s32 %s16, 1
      %s24 = ssub.s32 %s16, %s23
      %p25 = scmp.eq.s32.totalorder %s24, 0
      %s27 = sadd.s32 %s26, 1
      %s28 = scalar_select %p25, %s26, %s27
      %p31 = pneg %p25
      %p32 = scmp.eq.s32.totalorder %s16, 1
      %p33 = por %p31, %p32
      %p34 = scmp.ne.s32.totalorder %s26, %s29
      %p35 = scmp.eq.s32.totalorder %s16, 0
      %p36 = por %p34, %p35
      %p37 = scmp.ne.s32.totalorder %s26, %s29
      %p38 = scmp.eq.s32.totalorder %s21, 1
      %p39 = por %p37, %p38
      %p40 = scmp.ne.s32.totalorder %s29, %s30
      %p41 = scmp.eq.s32.totalorder %s21, 0
      %p42 = por %p40, %p41
      %p43 = scmp.ne.s32.totalorder %s29, %s30
      %p44 = scmp.eq.s32.totalorder %s22, 1
      %p45 = por %p43, %p44
      %p47 = scmp.ne.s32.totalorder %s30, %s46
      %p48 = scmp.eq.s32.totalorder %s22, 0
      %p49 = por %p47, %p48
      %s51 = sadd.s32 %s50, 1
      %p54 = scmp.eq.s32.totalorder %s16, 1
      %p55 = scmp.ne.s32.totalorder %s50, %s52
      %p56 = scmp.eq.s32.totalorder %s16, 0
      %p57 = por %p55, %p56
      %p58 = scmp.ne.s32.totalorder %s50, %s52
      %p59 = scmp.eq.s32.totalorder %s21, 1
      %p60 = por %p58, %p59
      %p61 = scmp.ne.s32.totalorder %s52, %s53
      %p62 = scmp.eq.s32.totalorder %s21, 0
      %p63 = por %p61, %p62
      %p64 = scmp.ne.s32.totalorder %s52, %s53
      %p65 = scmp.eq.s32.totalorder %s22, 1
      %p66 = por %p64, %p65
      %p68 = scmp.ne.s32.totalorder %s53, %s67
      %p69 = scmp.eq.s32.totalorder %s22, 0
      %p70 = por %p68, %p69
      %s72 = sadd.s32 %s71, 1
      %p75 = scmp.eq.s32.totalorder %s16, 1
      %p76 = scmp.ne.s32.totalorder %s71, %s73
      %p77 = scmp.eq.s32.totalorder %s16, 0
      %p78 = por %p76, %p77
      %p79 = scmp.ne.s32.totalorder %s71, %s73
      %p80 = scmp.eq.s32.totalorder %s21, 1
      %p81 = por %p79, %p80
      %p82 = scmp.ne.s32.totalorder %s73, %s74
      %p83 = scmp.eq.s32.totalorder %s21, 0
      %p84 = por %p82, %p83
      %p85 = scmp.ne.s32.totalorder %s73, %s74
      %p86 = scmp.eq.s32.totalorder %s22, 1
      %p87 = por %p85, %p86
      %p89 = scmp.ne.s32.totalorder %s74, %s88
      %p90 = scmp.eq.s32.totalorder %s22, 0
      %p91 = por %p89, %p90
      %s93 = sadd.s32 %s92, 1
      %p96 = scmp.eq.s32.totalorder %s16, 1
      %p97 = scmp.ne.s32.totalorder %s92, %s94
      %p98 = scmp.eq.s32.totalorder %s16, 0
      %p99 = por %p97, %p98
      %p100 = scmp.ne.s32.totalorder %s92, %s94
      %p101 = scmp.eq.s32.totalorder %s21, 1
      %p102 = por %p100, %p101
      %p103 = scmp.ne.s32.totalorder %s94, %s95
      %p104 = scmp.eq.s32.totalorder %s21, 0
      %p105 = por %p103, %p104
      %p106 = scmp.ne.s32.totalorder %s94, %s95
      %p107 = scmp.eq.s32.totalorder %s22, 1
      %p108 = por %p106, %p107
      %p110 = scmp.ne.s32.totalorder %s95, %s109
      %p111 = scmp.eq.s32.totalorder %s22, 0
      %p112 = por %p110, %p111
      %s114 = sadd.s32 %s113, 1
      %p117 = scmp.eq.s32.totalorder %s16, 1
      %p118 = scmp.ne.s32.totalorder %s113, %s115
      %p119 = scmp.eq.s32.totalorder %s16, 0
      %p120 = por %p118, %p119
      %p121 = scmp.ne.s32.totalorder %s113, %s115
      %p122 = scmp.eq.s32.totalorder %s21, 1
      %p123 = por %p121, %p122
      %p124 = scmp.ne.s32.totalorder %s115, %s116
      %p125 = scmp.eq.s32.totalorder %s21, 0
      %p126 = por %p124, %p125
      %p127 = scmp.ne.s32.totalorder %s115, %s116
      %p128 = scmp.eq.s32.totalorder %s22, 1
      %p129 = por %p127, %p128
      %p131 = scmp.ne.s32.totalorder %s116, %s130
      %p132 = scmp.eq.s32.totalorder %s22, 0
      %p133 = por %p131, %p132
      %s135 = sadd.s32 %s134, 1
      %p138 = scmp.eq.s32.totalorder %s16, 1
      %p139 = scmp.ne.s32.totalorder %s134, %s136
      %p140 = scmp.eq.s32.totalorder %s16, 0
      %p141 = por %p139, %p140
      %p142 = scmp.ne.s32.totalorder %s134, %s136
      %p143 = scmp.eq.s32.totalorder %s21, 1
      %p144 = por %p142, %p143
      %p145 = scmp.ne.s32.totalorder %s136, %s137
      %p146 = scmp.eq.s32.totalorder %s21, 0
      %p147 = por %p145, %p146
      %p148 = scmp.ne.s32.totalorder %s136, %s137
      %p149 = scmp.eq.s32.totalorder %s22, 1
      %p150 = por %p148, %p149
      %p152 = scmp.ne.s32.totalorder %s137, %s151
      %p153 = scmp.eq.s32.totalorder %s22, 0
      %p154 = por %p152, %p153
      %s156 = sadd.s32 %s155, 1
      %p159 = scmp.eq.s32.totalorder %s16, 1
      %p160 = scmp.ne.s32.totalorder %s155, %s157
      %p161 = scmp.eq.s32.totalorder %s16, 0
      %p162 = por %p160, %p161
      %p163 = scmp.ne.s32.totalorder %s155, %s157
      %p164 = scmp.eq.s32.totalorder %s21, 1
      %p165 = por %p163, %p164
      %p166 = scmp.ne.s32.totalorder %s157, %s158
      %p167 = scmp.eq.s32.totalorder %s21, 0
      %p168 = por %p166, %p167
      %p169 = scmp.ne.s32.totalorder %s157, %s158
      %p170 = scmp.eq.s32.totalorder %s22, 1
      %p171 = por %p169, %p170
      %p173 = scmp.ne.s32.totalorder %s158, %s172
      %p174 = scmp.eq.s32.totalorder %s22, 0
      %p175 = por %p173, %p174
      %s176 = ssub.s32 %s16, %s23
      %p177 = scmp.eq.s32.totalorder %s176, 0
      %s179 = sadd.s32 %s178, 1
      %s180 = scalar_select %p177, %s178, %s179
      %p183 = pneg %p177
      %p184 = scmp.eq.s32.totalorder %s16, 1
      %p185 = por %p183, %p184
      %p186 = scmp.ne.s32.totalorder %s178, %s181
      %p187 = scmp.eq.s32.totalorder %s16, 0
      %p188 = por %p186, %p187
      %p189 = scmp.ne.s32.totalorder %s178, %s181
      %p190 = scmp.eq.s32.totalorder %s21, 1
      %p191 = por %p189, %p190
      %p192 = scmp.ne.s32.totalorder %s181, %s182
      %p193 = scmp.eq.s32.totalorder %s21, 0
      %p194 = por %p192, %p193
      %p195 = scmp.ne.s32.totalorder %s181, %s182
      %p196 = scmp.eq.s32.totalorder %s22, 1
      %p197 = por %p195, %p196
      %p199 = scmp.ne.s32.totalorder %s182, %s198
      %p200 = scmp.eq.s32.totalorder %s22, 0
      %p201 = por %p199, %p200
      %p202 = scmp.le.s32.totalorder 1, %s16
      %p203 = scmp.lt.s32.totalorder %s16, 3
      %p204 = pnand %p202, %p203
      %p205 = pneg %p204
      // Predicated region
      $region9: #{tpu_custom_call.1} parent=5 // pred_check
        _
      $region10: #{tpu_custom_call.1} parent=5 // pred_check_branch
        %207 = sbr.rel (%p204) target = $region12
      $region11: #{tpu_custom_call.1} parent=5 // pred_region
        %s208 = ssub.s32 %s16, 1
        // Predicated region
        $region13: #{tpu_custom_call.1} parent=11 // pred_check
          %p209 = pneg %p63
        $region14: #{tpu_custom_call.1} parent=11 // pred_check_branch
          %211 = sbr.rel (%p209) target = $region16
        $region15: #{tpu_custom_call.1} parent=11 // pred_region
          _
        $region16: #{tpu_custom_call.1} parent=11 // pred_fallthru
          _
        // Predicated region
        $region17: #{tpu_custom_call.1} parent=11 // pred_check
          %p212 = pneg %p84
        $region18: #{tpu_custom_call.1} parent=11 // pred_check_branch
          %214 = sbr.rel (%p212) target = $region20
        $region19: #{tpu_custom_call.1} parent=11 // pred_region
          _
        $region20: #{tpu_custom_call.1} parent=11 // pred_fallthru
          _
        // Predicated region
        $region21: #{tpu_custom_call.1} parent=11 // pred_check
          %p215 = pneg %p105
        $region22: #{tpu_custom_call.1} parent=11 // pred_check_branch
          %217 = sbr.rel (%p215) target = $region24
        $region23: #{tpu_custom_call.1} parent=11 // pred_region
          _
        $region24: #{tpu_custom_call.1} parent=11 // pred_fallthru
          _
        // Predicated region
        $region25: #{tpu_custom_call.1} parent=11 // pred_check
          %p218 = pneg %p126
        $region26: #{tpu_custom_call.1} parent=11 // pred_check_branch
          %220 = sbr.rel (%p218) target = $region28
        $region27: #{tpu_custom_call.1} parent=11 // pred_region
          _
        $region28: #{tpu_custom_call.1} parent=11 // pred_fallthru
          _
        // Predicated region
        $region29: #{tpu_custom_call.1} parent=11 // pred_check
          %p221 = pneg %p147
        $region30: #{tpu_custom_call.1} parent=11 // pred_check_branch
          %223 = sbr.rel (%p221) target = $region32
        $region31: #{tpu_custom_call.1} parent=11 // pred_region
          _
        $region32: #{tpu_custom_call.1} parent=11 // pred_fallthru
          _
        // Predicated region
        $region33: #{tpu_custom_call.1} parent=11 // pred_check
          %p224 = pneg %p168
        $region34: #{tpu_custom_call.1} parent=11 // pred_check_branch
          %226 = sbr.rel (%p224) target = $region36
        $region35: #{tpu_custom_call.1} parent=11 // pred_region
          _
        $region36: #{tpu_custom_call.1} parent=11 // pred_fallthru
          _
      $region12: #{tpu_custom_call.1} parent=5 // pred_fallthru
        _
      %p227 = scmp.lt.s32.totalorder %s16, 2
      // Predicated region
      $region37: #{tpu_custom_call.1} parent=5 // pred_check
        %p228 = pneg %p227
      $region38: #{tpu_custom_call.1} parent=5 // pred_check_branch
        %230 = sbr.rel (%p228) target = $region40
      $region39: #{tpu_custom_call.1} parent=5 // pred_region
        // Predicated region
        $region41: #{tpu_custom_call.1} parent=39 // pred_check
          %p231 = pneg %p36
        $region42: #{tpu_custom_call.1} parent=39 // pred_check_branch
          %233 = sbr.rel (%p231) target = $region44
        $region43: #{tpu_custom_call.1} parent=39 // pred_region
          %p234 = scmp.lt.s32.totalorder %s16, 1
          %s235 = scalar_select %p234, %s16, 1
          %s236 = smul.addr %s235, 2
          %s237 = scalar_lea.vmem %s0, %s236
        $region44: #{tpu_custom_call.1} parent=39 // pred_fallthru
          _
      $region40: #{tpu_custom_call.1} parent=5 // pred_fallthru
        _
      %p238 = scmp.le.s32.totalorder 1, %s16
      %p239 = scmp.lt.s32.totalorder %s16, 3
      %p240 = pnand %p238, %p239
      %p241 = pneg %p240
      // Predicated region
      $region45: #{tpu_custom_call.1} parent=5 // pred_check
        _
      $region46: #{tpu_custom_call.1} parent=5 // pred_check_branch
        %243 = sbr.rel (%p240) target = $region48
      $region47: #{tpu_custom_call.1} parent=5 // pred_region
        %s244 = ssub.s32 %s16, 1
        %p245 = scmp.lt.s32.totalorder %s21, 1
        %s246 = scalar_select %p245, %s21, 1
        %s247 = smul.addr %s246, 2
        %s248 = scalar_lea.vmem %s0, %s247
        %p249 = pneg %p42
        %p250 = pneg %p39
        %p251 = pneg %p63
        %p252 = pneg %p60
        %p253 = pneg %p84
        %p254 = pneg %p81
        %p255 = pneg %p105
        %p256 = pneg %p102
        %p257 = pneg %p126
        %p258 = pneg %p123
        %p259 = pneg %p147
        %p260 = pneg %p144
        %p261 = pneg %p168
        %p262 = pneg %p165
        %p263 = pneg %p194
        %p264 = pneg %p191
        %s265 = sand.u32 %s181, 1
        %s266 = scalar_lea.sflag [#allocation3], %s265
        %s267 = sand.u32 %s181, 1
        %s268 = smul.addr %s267, 2
        %s269 = scalar_lea.vmem [#allocation2], %s268
        %p270 = scmp.lt.s32.totalorder %s21, 1
        %s271 = scalar_select %p270, %s21, 1
        %s272 = smul.addr %s271, 2
        %s273 = scalar_lea.vmem %s0, %s272
        %v274 = vld [vmem:[%s273] sm:$0x1]
        %v275 = vld [vmem:[%s273 + $0x1] sm:$0x1]
        %v276 = vld [vmem:[%s1] sm:$0xff]
        %v277 = vld [vmem:[%s1 + $0x8] sm:$0xff]
        %279 = vset.pattern.permute.xlu0 0
        %280 = vperm.xlu0 %279, %v276
        %v281 = vpop.permute.xlu0 %280
        %284 = vset.pattern.permute.xlu0 0
        %285 = vperm.xlu0 %284, %v277
        %v286 = vpop.permute.xlu0 %285
        %v288 = vlaneseq
        %v289 = vshrl.u32 %v288, 7
        %v290 = vsub.s32 0, %v289
        %v291 = vrot.slane %v274, %v290
        %v292 = vmul.f32 %v281, %v291
        %v293 = vmul.f32 %v286, %v291
        %v294 = vld [vmem:[%s2] sm:$0xff]
        %v295 = vld [vmem:[%s2 + $0x8] sm:$0xff]
        %297 = vset.pattern.permute.xlu0 0
        %298 = vperm.xlu0 %297, %v294
        %v299 = vpop.permute.xlu0 %298
        %302 = vset.pattern.permute.xlu0 0
        %303 = vperm.xlu0 %302, %v295
        %v304 = vpop.permute.xlu0 %303
        %v306 = vadd.f32 %v292, %v299
        %v307 = vadd.f32 %v293, %v304
        %v308 = vmul.f32 %v306, 0.01
        %v309 = vmul.f32 %v307, 0.01
        %v310 = vmax.f32 %v306, %v308
        %v311 = vmax.f32 %v307, %v309
        %v312 = vld [vmem:[%s3] sm:$0xff]
        %v313 = vld [vmem:[%s3 + $0x8] sm:$0xff]
        %v314 = vld [vmem:[%s4] sm:$0xff]
        %v315 = vld [vmem:[%s4 + $0x8] sm:$0xff]
        %317 = vset.pattern.permute.xlu0 0
        %318 = vperm.xlu0 %317, %v314
        %v319 = vpop.permute.xlu0 %318
        %322 = vset.pattern.permute.xlu0 0
        %323 = vperm.xlu0 %322, %v315
        %v324 = vpop.permute.xlu0 %323
        %vm326 = vcmask 130048
        %v328 = vsel %vm326, %v312, 0
        %v331 = vsel %vm326, %v313, 0
        %333 = vmatprep.subr.mxu0 0.0
        %334 = vmatpush1.msra.mxu0 %v310
        %335 = vmatprep.subr.mxu0 0.0
        %336 = vmatpush1.msra.mxu0 %v311
        %337 = vmatprep.subr.mxu0 0.0
        %338 = vmatpush1.msra.mxu0 0.0
        %339 = vmatprep.subr.mxu0 0.0
        %340 = vmatpush1.msra.mxu0 0.0
        %341 = vmatprep.subr.mxu0 0.0
        %342 = vmatpush1.msra.mxu0 0.0
        %343 = vmatprep.subr.mxu0 0.0
        %344 = vmatpush1.msra.mxu0 0.0
        %345 = vmatprep.subr.mxu0 0.0
        %346 = vmatpush1.msra.mxu0 0.0
        %347 = vmatprep.subr.mxu0 0.0
        %348 = vmatpush1.msra.mxu0 0.0
        %349 = vmatprep.subr.mxu0 0.0
        %350 = vmatpush1.msra.mxu0 0.0
        %351 = vmatprep.subr.mxu0 0.0
        %352 = vmatpush1.msra.mxu0 0.0
        %353 = vmatprep.subr.mxu0 0.0
        %354 = vmatpush1.msra.mxu0 0.0
        %355 = vmatprep.subr.mxu0 0.0
        %356 = vmatpush1.msra.mxu0 0.0
        %357 = vmatprep.subr.mxu0 0.0
        %358 = vmatpush1.msra.mxu0 0.0
        %359 = vmatprep.subr.mxu0 0.0
        %360 = vmatpush1.msra.mxu0 0.0
        %361 = vmatprep.subr.mxu0 0.0
        %362 = vmatpush1.msra.mxu0 0.0
        %363 = vmatprep.subr.mxu0 0.0
        %364 = vmatpush1.msra.mxu0 0.0
        %365 = vmatprep.subr.mxu0 0.0
        %366 = vmatpush1.msra.mxu0 0.0
        %367 = vmatprep.subr.mxu0 0.0
        %368 = vmatpush1.msra.mxu0 0.0
        %369 = vmatprep.subr.mxu0 0.0
        %370 = vmatpush1.msra.mxu0 0.0
        %371 = vmatprep.subr.mxu0 0.0
        %372 = vmatpush1.msra.mxu0 0.0
        %373 = vmatprep.subr.mxu0 0.0
        %374 = vmatpush1.msra.mxu0 0.0
        %375 = vmatprep.subr.mxu0 0.0
        %376 = vmatpush1.msra.mxu0 0.0
        %377 = vmatprep.subr.mxu0 0.0
        %378 = vmatpush1.msra.mxu0 0.0
        %379 = vmatprep.subr.mxu0 0.0
        %380 = vmatpush1.msra.mxu0 0.0
        %381 = vmatprep.subr.mxu0 0.0
        %382 = vmatpush1.msra.mxu0 0.0
        %383 = vmatprep.subr.mxu0 0.0
        %384 = vmatpush1.msra.mxu0 0.0
        %385 = vmatprep.subr.mxu0 0.0
        %386 = vmatpush1.msra.mxu0 0.0
        %387 = vmatprep.subr.mxu0 0.0
        %388 = vmatpush1.msra.mxu0 0.0
        %389 = vmatprep.subr.mxu0 0.0
        %390 = vmatpush1.msra.mxu0 0.0
        %391 = vmatprep.subr.mxu0 0.0
        %392 = vmatpush1.msra.mxu0 0.0
        %393 = vmatprep.subr.mxu0 0.0
        %394 = vmatpush1.msra.mxu0 0.0
        %395 = vmatprep.subr.mxu0 0.0
        %396 = vmatpush1.msra.mxu0 0.0
        %397 = vmatprep.mubr.f32.mxu0 0.0
        %398 = vmatmul.mubr.f32.gmra.mrb[0].mxu0 %v328
        %v399 = vpop.f32.mrb[0].mxu0
        %v400 = vadd.f32 %v319, %v399
        %v401 = vpop.f32.mrb[0].mxu0
        %402 = vmatprep.mubr.f32.mxu0 0.0
        %403 = vmatmul.mubr.f32.gmra.mrb[0].mxu0 %v331
        %v404 = vpop.f32.mrb[0].mxu0
        %v405 = vadd.f32 %v324, %v404
        %v406 = vpop.f32.mrb[0].mxu0
        %407 = vdwg.mxu0
        %v408 = vmul.f32 %v400, 0.01
        %v409 = vmul.f32 %v405, 0.01
        %v410 = vmax.f32 %v400, %v408
        %v411 = vmax.f32 %v405, %v409
        %s412 = scalar_lea.vmem %s3, 16
        %v413 = vld [vmem:[%s412] sm:$0xff]
        %v414 = vld [vmem:[%s412 + $0x8] sm:$0xff]
        %s415 = scalar_lea.vmem %s4, 16
        %v416 = vld [vmem:[%s415] sm:$0xff]
        %v417 = vld [vmem:[%s415 + $0x8] sm:$0xff]
        %419 = vset.pattern.permute.xlu0 0
        %420 = vperm.xlu0 %419, %v416
        %v421 = vpop.permute.xlu0 %420
        %424 = vset.pattern.permute.xlu0 0
        %425 = vperm.xlu0 %424, %v417
        %v426 = vpop.permute.xlu0 %425
        %v429 = vsel %vm326, %v413, 0
        %v432 = vsel %vm326, %v414, 0
        %434 = vmatprep.subr.mxu0 0.0
        %435 = vmatpush1.msra.mxu0 %v410
        %436 = vmatprep.subr.mxu0 0.0
        %437 = vmatpush1.msra.mxu0 %v411
        %438 = vmatprep.subr.mxu0 0.0
        %439 = vmatpush1.msra.mxu0 0.0
        %440 = vmatprep.subr.mxu0 0.0
        %441 = vmatpush1.msra.mxu0 0.0
        %442 = vmatprep.subr.mxu0 0.0
        %443 = vmatpush1.msra.mxu0 0.0
        %444 = vmatprep.subr.mxu0 0.0
        %445 = vmatpush1.msra.mxu0 0.0
        %446 = vmatprep.subr.mxu0 0.0
        %447 = vmatpush1.msra.mxu0 0.0
        %448 = vmatprep.subr.mxu0 0.0
        %449 = vmatpush1.msra.mxu0 0.0
        %450 = vmatprep.subr.mxu0 0.0
        %451 = vmatpush1.msra.mxu0 0.0
        %452 = vmatprep.subr.mxu0 0.0
        %453 = vmatpush1.msra.mxu0 0.0
        %454 = vmatprep.subr.mxu0 0.0
        %455 = vmatpush1.msra.mxu0 0.0
        %456 = vmatprep.subr.mxu0 0.0
        %457 = vmatpush1.msra.mxu0 0.0
        %458 = vmatprep.subr.mxu0 0.0
        %459 = vmatpush1.msra.mxu0 0.0
        %460 = vmatprep.subr.mxu0 0.0
        %461 = vmatpush1.msra.mxu0 0.0
        %462 = vmatprep.subr.mxu0 0.0
        %463 = vmatpush1.msra.mxu0 0.0
        %464 = vmatprep.subr.mxu0 0.0
        %465 = vmatpush1.msra.mxu0 0.0
        %466 = vmatprep.subr.mxu0 0.0
        %467 = vmatpush1.msra.mxu0 0.0
        %468 = vmatprep.subr.mxu0 0.0
        %469 = vmatpush1.msra.mxu0 0.0
        %470 = vmatprep.subr.mxu0 0.0
        %471 = vmatpush1.msra.mxu0 0.0
        %472 = vmatprep.subr.mxu0 0.0
        %473 = vmatpush1.msra.mxu0 0.0
        %474 = vmatprep.subr.mxu0 0.0
        %475 = vmatpush1.msra.mxu0 0.0
        %476 = vmatprep.subr.mxu0 0.0
        %477 = vmatpush1.msra.mxu0 0.0
        %478 = vmatprep.subr.mxu0 0.0
        %479 = vmatpush1.msra.mxu0 0.0
        %480 = vmatprep.subr.mxu0 0.0
        %481 = vmatpush1.msra.mxu0 0.0
        %482 = vmatprep.subr.mxu0 0.0
        %483 = vmatpush1.msra.mxu0 0.0
        %484 = vmatprep.subr.mxu0 0.0
        %485 = vmatpush1.msra.mxu0 0.0
        %486 = vmatprep.subr.mxu0 0.0
        %487 = vmatpush1.msra.mxu0 0.0
        %488 = vmatprep.subr.mxu0 0.0
        %489 = vmatpush1.msra.mxu0 0.0
        %490 = vmatprep.subr.mxu0 0.0
        %491 = vmatpush1.msra.mxu0 0.0
        %492 = vmatprep.subr.mxu0 0.0
        %493 = vmatpush1.msra.mxu0 0.0
        %494 = vmatprep.subr.mxu0 0.0
        %495 = vmatpush1.msra.mxu0 0.0
        %496 = vmatprep.subr.mxu0 0.0
        %497 = vmatpush1.msra.mxu0 0.0
        %498 = vmatprep.mubr.f32.mxu0 0.0
        %499 = vmatmul.mubr.f32.gmra.mrb[0].mxu0 %v429
        %v500 = vpop.f32.mrb[0].mxu0
        %v501 = vadd.f32 %v421, %v500
        %v502 = vpop.f32.mrb[0].mxu0
        %503 = vmatprep.mubr.f32.mxu0 0.0
        %504 = vmatmul.mubr.f32.gmra.mrb[0].mxu0 %v432
        %v505 = vpop.f32.mrb[0].mxu0
        %v506 = vadd.f32 %v426, %v505
        %v507 = vpop.f32.mrb[0].mxu0
        %508 = vdwg.mxu0
        %v509 = vmul.f32 %v501, 0.01
        %v510 = vmul.f32 %v506, 0.01
        %v511 = vmax.f32 %v501, %v509
        %v512 = vmax.f32 %v506, %v510
        %s513 = scalar_lea.vmem %s3, 32
        %v514 = vld [vmem:[%s513] sm:$0xff]
        %v515 = vld [vmem:[%s513 + $0x8] sm:$0xff]
        %s516 = scalar_lea.vmem %s4, 32
        %v517 = vld [vmem:[%s516] sm:$0xff]
        %v518 = vld [vmem:[%s516 + $0x8] sm:$0xff]
        %520 = vset.pattern.permute.xlu0 0
        %521 = vperm.xlu0 %520, %v517
        %v522 = vpop.permute.xlu0 %521
        %525 = vset.pattern.permute.xlu0 0
        %526 = vperm.xlu0 %525, %v518
        %v527 = vpop.permute.xlu0 %526
        %v530 = vsel %vm326, %v514, 0
        %v533 = vsel %vm326, %v515, 0
        %535 = vmatprep.subr.mxu0 0.0
        %536 = vmatpush1.msra.mxu0 %v511
        %537 = vmatprep.subr.mxu0 0.0
        %538 = vmatpush1.msra.mxu0 %v512
        %539 = vmatprep.subr.mxu0 0.0
        %540 = vmatpush1.msra.mxu0 0.0
        %541 = vmatprep.subr.mxu0 0.0
        %542 = vmatpush1.msra.mxu0 0.0
        %543 = vmatprep.subr.mxu0 0.0
        %544 = vmatpush1.msra.mxu0 0.0
        %545 = vmatprep.subr.mxu0 0.0
        %546 = vmatpush1.msra.mxu0 0.0
        %547 = vmatprep.subr.mxu0 0.0
        %548 = vmatpush1.msra.mxu0 0.0
        %549 = vmatprep.subr.mxu0 0.0
        %550 = vmatpush1.msra.mxu0 0.0
        %551 = vmatprep.subr.mxu0 0.0
        %552 = vmatpush1.msra.mxu0 0.0
        %553 = vmatprep.subr.mxu0 0.0
        %554 = vmatpush1.msra.mxu0 0.0
        %555 = vmatprep.subr.mxu0 0.0
        %556 = vmatpush1.msra.mxu0 0.0
        %557 = vmatprep.subr.mxu0 0.0
        %558 = vmatpush1.msra.mxu0 0.0
        %559 = vmatprep.subr.mxu0 0.0
        %560 = vmatpush1.msra.mxu0 0.0
        %561 = vmatprep.subr.mxu0 0.0
        %562 = vmatpush1.msra.mxu0 0.0
        %563 = vmatprep.subr.mxu0 0.0
        %564 = vmatpush1.msra.mxu0 0.0
        %565 = vmatprep.subr.mxu0 0.0
        %566 = vmatpush1.msra.mxu0 0.0
        %567 = vmatprep.subr.mxu0 0.0
        %568 = vmatpush1.msra.mxu0 0.0
        %569 = vmatprep.subr.mxu0 0.0
        %570 = vmatpush1.msra.mxu0 0.0
        %571 = vmatprep.subr.mxu0 0.0
        %572 = vmatpush1.msra.mxu0 0.0
        %573 = vmatprep.subr.mxu0 0.0
        %574 = vmatpush1.msra.mxu0 0.0
        %575 = vmatprep.subr.mxu0 0.0
        %576 = vmatpush1.msra.mxu0 0.0
        %577 = vmatprep.subr.mxu0 0.0
        %578 = vmatpush1.msra.mxu0 0.0
        %579 = vmatprep.subr.mxu0 0.0
        %580 = vmatpush1.msra.mxu0 0.0
        %581 = vmatprep.subr.mxu0 0.0
        %582 = vmatpush1.msra.mxu0 0.0
        %583 = vmatprep.subr.mxu0 0.0
        %584 = vmatpush1.msra.mxu0 0.0
        %585 = vmatprep.subr.mxu0 0.0
        %586 = vmatpush1.msra.mxu0 0.0
        %587 = vmatprep.subr.mxu0 0.0
        %588 = vmatpush1.msra.mxu0 0.0
        %589 = vmatprep.subr.mxu0 0.0
        %590 = vmatpush1.msra.mxu0 0.0
        %591 = vmatprep.subr.mxu0 0.0
        %592 = vmatpush1.msra.mxu0 0.0
        %593 = vmatprep.subr.mxu0 0.0
        %594 = vmatpush1.msra.mxu0 0.0
        %595 = vmatprep.subr.mxu0 0.0
        %596 = vmatpush1.msra.mxu0 0.0
        %597 = vmatprep.subr.mxu0 0.0
        %598 = vmatpush1.msra.mxu0 0.0
        %599 = vmatprep.mubr.f32.mxu0 0.0
        %600 = vmatmul.mubr.f32.gmra.mrb[0].mxu0 %v530
        %v601 = vpop.f32.mrb[0].mxu0
        %v602 = vadd.f32 %v522, %v601
        %v603 = vpop.f32.mrb[0].mxu0
        %604 = vmatprep.mubr.f32.mxu0 0.0
        %605 = vmatmul.mubr.f32.gmra.mrb[0].mxu0 %v533
        %v606 = vpop.f32.mrb[0].mxu0
        %v607 = vadd.f32 %v527, %v606
        %v608 = vpop.f32.mrb[0].mxu0
        %609 = vdwg.mxu0
        %v610 = vmul.f32 %v602, 0.01
        %v611 = vmul.f32 %v607, 0.01
        %v612 = vmax.f32 %v602, %v610
        %v613 = vmax.f32 %v607, %v611
        %v614 = vld [vmem:[%s5] sm:$0x3]
        %v615 = vld [vmem:[%s6] sm:$0x3]
        %617 = vset.pattern.permute.xlu0 0
        %618 = vperm.xlu0 %617, %v615
        %v619 = vpop.permute.xlu0 %618
        %v622 = vsel %vm326, %v614, 0
        %624 = vmatprep.subr.mxu0 0.0
        %625 = vmatpush1.msra.mxu0 %v612
        %626 = vmatprep.subr.mxu0 0.0
        %627 = vmatpush1.msra.mxu0 %v613
        %628 = vmatprep.subr.mxu0 0.0
        %629 = vmatpush1.msra.mxu0 0.0
        %630 = vmatprep.subr.mxu0 0.0
        %631 = vmatpush1.msra.mxu0 0.0
        %632 = vmatprep.subr.mxu0 0.0
        %633 = vmatpush1.msra.mxu0 0.0
        %634 = vmatprep.subr.mxu0 0.0
        %635 = vmatpush1.msra.mxu0 0.0
        %636 = vmatprep.subr.mxu0 0.0
        %637 = vmatpush1.msra.mxu0 0.0
        %638 = vmatprep.subr.mxu0 0.0
        %639 = vmatpush1.msra.mxu0 0.0
        %640 = vmatprep.subr.mxu0 0.0
        %641 = vmatpush1.msra.mxu0 0.0
        %642 = vmatprep.subr.mxu0 0.0
        %643 = vmatpush1.msra.mxu0 0.0
        %644 = vmatprep.subr.mxu0 0.0
        %645 = vmatpush1.msra.mxu0 0.0
        %646 = vmatprep.subr.mxu0 0.0
        %647 = vmatpush1.msra.mxu0 0.0
        %648 = vmatprep.subr.mxu0 0.0
        %649 = vmatpush1.msra.mxu0 0.0
        %650 = vmatprep.subr.mxu0 0.0
        %651 = vmatpush1.msra.mxu0 0.0
        %652 = vmatprep.subr.mxu0 0.0
        %653 = vmatpush1.msra.mxu0 0.0
        %654 = vmatprep.subr.mxu0 0.0
        %655 = vmatpush1.msra.mxu0 0.0
        %656 = vmatprep.subr.mxu0 0.0
        %657 = vmatpush1.msra.mxu0 0.0
        %658 = vmatprep.subr.mxu0 0.0
        %659 = vmatpush1.msra.mxu0 0.0
        %660 = vmatprep.subr.mxu0 0.0
        %661 = vmatpush1.msra.mxu0 0.0
        %662 = vmatprep.subr.mxu0 0.0
        %663 = vmatpush1.msra.mxu0 0.0
        %664 = vmatprep.subr.mxu0 0.0
        %665 = vmatpush1.msra.mxu0 0.0
        %666 = vmatprep.subr.mxu0 0.0
        %667 = vmatpush1.msra.mxu0 0.0
        %668 = vmatprep.subr.mxu0 0.0
        %669 = vmatpush1.msra.mxu0 0.0
        %670 = vmatprep.subr.mxu0 0.0
        %671 = vmatpush1.msra.mxu0 0.0
        %672 = vmatprep.subr.mxu0 0.0
        %673 = vmatpush1.msra.mxu0 0.0
        %674 = vmatprep.subr.mxu0 0.0
        %675 = vmatpush1.msra.mxu0 0.0
        %676 = vmatprep.subr.mxu0 0.0
        %677 = vmatpush1.msra.mxu0 0.0
        %678 = vmatprep.subr.mxu0 0.0
        %679 = vmatpush1.msra.mxu0 0.0
        %680 = vmatprep.subr.mxu0 0.0
        %681 = vmatpush1.msra.mxu0 0.0
        %682 = vmatprep.subr.mxu0 0.0
        %683 = vmatpush1.msra.mxu0 0.0
        %684 = vmatprep.subr.mxu0 0.0
        %685 = vmatpush1.msra.mxu0 0.0
        %686 = vmatprep.subr.mxu0 0.0
        %687 = vmatpush1.msra.mxu0 0.0
        %688 = vmatprep.mubr.f32.mxu0 0.0
        %689 = vmatmul.mubr.f32.gmra.mrb[0].mxu0 %v622
        %v690 = vpop.f32.mrb[0].mxu0
        %v691 = vadd.f32 %v619, %v690
        %v692 = vpop.f32.mrb[0].mxu0
        %693 = vdwg.mxu0
        %v694 = vmul.f32 %v691, 1.442695
        %v695 = vpow.pop %v694
        %v696 = vmul.f32 %v275, %v695
        %v698 = vrot.slane %v691, 1
        %v700 = vadd.f32 %v696, %v698
        %s701 = scalar_lea.vmem %s1, 16
        %v702 = vld [vmem:[%s701] sm:$0xff]
        %v703 = vld [vmem:[%s701 + $0x8] sm:$0xff]
        %705 = vset.pattern.permute.xlu0 0
        %706 = vperm.xlu0 %705, %v702
        %v707 = vpop.permute.xlu0 %706
        %710 = vset.pattern.permute.xlu0 0
        %711 = vperm.xlu0 %710, %v703
        %v712 = vpop.permute.xlu0 %711
        %v714 = vlaneseq
        %v715 = vshrl.u32 %v714, 7
        %v716 = vsub.s32 0, %v715
        %v717 = vrot.slane %v700, %v716
        %v718 = vmul.f32 %v707, %v717
        %v719 = vmul.f32 %v712, %v717
        %s720 = scalar_lea.vmem %s2, 16
        %v721 = vld [vmem:[%s720] sm:$0xff]
        %v722 = vld [vmem:[%s720 + $0x8] sm:$0xff]
        %724 = vset.pattern.permute.xlu0 0
        %725 = vperm.xlu0 %724, %v721
        %v726 = vpop.permute.xlu0 %725
        %729 = vset.pattern.permute.xlu0 0
        %730 = vperm.xlu0 %729, %v722
        %v731 = vpop.permute.xlu0 %730
        %v733 = vadd.f32 %v718, %v726
        %v734 = vadd.f32 %v719, %v731
        %v735 = vmul.f32 %v733, 0.01
        %v736 = vmul.f32 %v734, 0.01
        %v737 = vmax.f32 %v733, %v735
        %v738 = vmax.f32 %v734, %v736
        %s739 = scalar_lea.vmem %s3, 48
        %v740 = vld [vmem:[%s739] sm:$0xff]
        %v741 = vld [vmem:[%s739 + $0x8] sm:$0xff]
        %s742 = scalar_lea.vmem %s4, 48
        %v743 = vld [vmem:[%s742] sm:$0xff]
        %v744 = vld [vmem:[%s742 + $0x8] sm:$0xff]
        %746 = vset.pattern.permute.xlu0 0
        %747 = vperm.xlu0 %746, %v743
        %v748 = vpop.permute.xlu0 %747
        %751 = vset.pattern.permute.xlu0 0
        %752 = vperm.xlu0 %751, %v744
        %v753 = vpop.permute.xlu0 %752
        %v756 = vsel %vm326, %v740, 0
        %v759 = vsel %vm326, %v741, 0
        %761 = vmatprep.subr.mxu0 0.0
        %762 = vmatpush1.msra.mxu0 %v737
        %763 = vmatprep.subr.mxu0 0.0
        %764 = vmatpush1.msra.mxu0 %v738
        %765 = vmatprep.subr.mxu0 0.0
        %766 = vmatpush1.msra.mxu0 0.0
        %767 = vmatprep.subr.mxu0 0.0
        %768 = vmatpush1.msra.mxu0 0.0
        %769 = vmatprep.subr.mxu0 0.0
        %770 = vmatpush1.msra.mxu0 0.0
        %771 = vmatprep.subr.mxu0 0.0
        %772 = vmatpush1.msra.mxu0 0.0
        %773 = vmatprep.subr.mxu0 0.0
        %774 = vmatpush1.msra.mxu0 0.0
        %775 = vmatprep.subr.mxu0 0.0
        %776 = vmatpush1.msra.mxu0 0.0
        %777 = vmatprep.subr.mxu0 0.0
        %778 = vmatpush1.msra.mxu0 0.0
        %779 = vmatprep.subr.mxu0 0.0
        %780 = vmatpush1.msra.mxu0 0.0
        %781 = vmatprep.subr.mxu0 0.0
        %782 = vmatpush1.msra.mxu0 0.0
        %783 = vmatprep.subr.mxu0 0.0
        %784 = vmatpush1.msra.mxu0 0.0
        %785 = vmatprep.subr.mxu0 0.0
        %786 = vmatpush1.msra.mxu0 0.0
        %787 = vmatprep.subr.mxu0 0.0
        %788 = vmatpush1.msra.mxu0 0.0
        %789 = vmatprep.subr.mxu0 0.0
        %790 = vmatpush1.msra.mxu0 0.0
        %791 = vmatprep.subr.mxu0 0.0
        %792 = vmatpush1.msra.mxu0 0.0
        %793 = vmatprep.subr.mxu0 0.0
        %794 = vmatpush1.msra.mxu0 0.0
        %795 = vmatprep.subr.mxu0 0.0
        %796 = vmatpush1.msra.mxu0 0.0
        %797 = vmatprep.subr.mxu0 0.0
        %798 = vmatpush1.msra.mxu0 0.0
        %799 = vmatprep.subr.mxu0 0.0
        %800 = vmatpush1.msra.mxu0 0.0
        %801 = vmatprep.subr.mxu0 0.0
        %802 = vmatpush1.msra.mxu0 0.0
        %803 = vmatprep.subr.mxu0 0.0
        %804 = vmatpush1.msra.mxu0 0.0
        %805 = vmatprep.subr.mxu0 0.0
        %806 = vmatpush1.msra.mxu0 0.0
        %807 = vmatprep.subr.mxu0 0.0
        %808 = vmatpush1.msra.mxu0 0.0
        %809 = vmatprep.subr.mxu0 0.0
        %810 = vmatpush1.msra.mxu0 0.0
        %811 = vmatprep.subr.mxu0 0.0
        %812 = vmatpush1.msra.mxu0 0.0
        %813 = vmatprep.subr.mxu0 0.0
        %814 = vmatpush1.msra.mxu0 0.0
        %815 = vmatprep.subr.mxu0 0.0
        %816 = vmatpush1.msra.mxu0 0.0
        %817 = vmatprep.subr.mxu0 0.0
        %818 = vmatpush1.msra.mxu0 0.0
        %819 = vmatprep.subr.mxu0 0.0
        %820 = vmatpush1.msra.mxu0 0.0
        %821 = vmatprep.subr.mxu0 0.0
        %822 = vmatpush1.msra.mxu0 0.0
        %823 = vmatprep.subr.mxu0 0.0
        %824 = vmatpush1.msra.mxu0 0.0
        %825 = vmatprep.mubr.f32.mxu0 0.0
        %826 = vmatmul.mubr.f32.gmra.mrb[0].mxu0 %v756
        %v827 = vpop.f32.mrb[0].mxu0
        %v828 = vadd.f32 %v748, %v827
        %v829 = vpop.f32.mrb[0].mxu0
        %830 = vmatprep.mubr.f32.mxu0 0.0
        %831 = vmatmul.mubr.f32.gmra.mrb[0].mxu0 %v759
        %v832 = vpop.f32.mrb[0].mxu0
        %v833 = vadd.f32 %v753, %v832
        %v834 = vpop.f32.mrb[0].mxu0
        %835 = vdwg.mxu0
        %v836 = vmul.f32 %v828, 0.01
        %v837 = vmul.f32 %v833, 0.01
        %v838 = vmax.f32 %v828, %v836
        %v839 = vmax.f32 %v833, %v837
        %s840 = scalar_lea.vmem %s3, 64
        %v841 = vld [vmem:[%s840] sm:$0xff]
        %v842 = vld [vmem:[%s840 + $0x8] sm:$0xff]
        %s843 = scalar_lea.vmem %s4, 64
        %v844 = vld [vmem:[%s843] sm:$0xff]
        %v845 = vld [vmem:[%s843 + $0x8] sm:$0xff]
        %847 = vset.pattern.permute.xlu0 0
        %848 = vperm.xlu0 %847, %v844
        %v849 = vpop.permute.xlu0 %848
        %852 = vset.pattern.permute.xlu0 0
        %853 = vperm.xlu0 %852, %v845
        %v854 = vpop.permute.xlu0 %853
        %v857 = vsel %vm326, %v841, 0
        %v860 = vsel %vm326, %v842, 0
        %862 = vmatprep.subr.mxu0 0.0
        %863 = vmatpush1.msra.mxu0 %v838
        %864 = vmatprep.subr.mxu0 0.0
        %865 = vmatpush1.msra.mxu0 %v839
        %866 = vmatprep.subr.mxu0 0.0
        %867 = vmatpush1.msra.mxu0 0.0
        %868 = vmatprep.subr.mxu0 0.0
        %869 = vmatpush1.msra.mxu0 0.0
        %870 = vmatprep.subr.mxu0 0.0
        %871 = vmatpush1.msra.mxu0 0.0
        %872 = vmatprep.subr.mxu0 0.0
        %873 = vmatpush1.msra.mxu0 0.0
        %874 = vmatprep.subr.mxu0 0.0
        %875 = vmatpush1.msra.mxu0 0.0
        %876 = vmatprep.subr.mxu0 0.0
        %877 = vmatpush1.msra.mxu0 0.0
        %878 = vmatprep.subr.mxu0 0.0
        %879 = vmatpush1.msra.mxu0 0.0
        %880 = vmatprep.subr.mxu0 0.0
        %881 = vmatpush1.msra.mxu0 0.0
        %882 = vmatprep.subr.mxu0 0.0
        %883 = vmatpush1.msra.mxu0 0.0
        %884 = vmatprep.subr.mxu0 0.0
        %885 = vmatpush1.msra.mxu0 0.0
        %886 = vmatprep.subr.mxu0 0.0
        %887 = vmatpush1.msra.mxu0 0.0
        %888 = vmatprep.subr.mxu0 0.0
        %889 = vmatpush1.msra.mxu0 0.0
        %890 = vmatprep.subr.mxu0 0.0
        %891 = vmatpush1.msra.mxu0 0.0
        %892 = vmatprep.subr.mxu0 0.0
        %893 = vmatpush1.msra.mxu0 0.0
        %894 = vmatprep.subr.mxu0 0.0
        %895 = vmatpush1.msra.mxu0 0.0
        %896 = vmatprep.subr.mxu0 0.0
        %897 = vmatpush1.msra.mxu0 0.0
        %898 = vmatprep.subr.mxu0 0.0
        %899 = vmatpush1.msra.mxu0 0.0
        %900 = vmatprep.subr.mxu0 0.0
        %901 = vmatpush1.msra.mxu0 0.0
        %902 = vmatprep.subr.mxu0 0.0
        %903 = vmatpush1.msra.mxu0 0.0
        %904 = vmatprep.subr.mxu0 0.0
        %905 = vmatpush1.msra.mxu0 0.0
        %906 = vmatprep.subr.mxu0 0.0
        %907 = vmatpush1.msra.mxu0 0.0
        %908 = vmatprep.subr.mxu0 0.0
        %909 = vmatpush1.msra.mxu0 0.0
        %910 = vmatprep.subr.mxu0 0.0
        %911 = vmatpush1.msra.mxu0 0.0
        %912 = vmatprep.subr.mxu0 0.0
        %913 = vmatpush1.msra.mxu0 0.0
        %914 = vmatprep.subr.mxu0 0.0
        %915 = vmatpush1.msra.mxu0 0.0
        %916 = vmatprep.subr.mxu0 0.0
        %917 = vmatpush1.msra.mxu0 0.0
        %918 = vmatprep.subr.mxu0 0.0
        %919 = vmatpush1.msra.mxu0 0.0
        %920 = vmatprep.subr.mxu0 0.0
        %921 = vmatpush1.msra.mxu0 0.0
        %922 = vmatprep.subr.mxu0 0.0
        %923 = vmatpush1.msra.mxu0 0.0
        %924 = vmatprep.subr.mxu0 0.0
        %925 = vmatpush1.msra.mxu0 0.0
        %926 = vmatprep.mubr.f32.mxu0 0.0
        %927 = vmatmul.mubr.f32.gmra.mrb[0].mxu0 %v857
        %v928 = vpop.f32.mrb[0].mxu0
        %v929 = vadd.f32 %v849, %v928
        %v930 = vpop.f32.mrb[0].mxu0
        %931 = vmatprep.mubr.f32.mxu0 0.0
        %932 = vmatmul.mubr.f32.gmra.mrb[0].mxu0 %v860
        %v933 = vpop.f32.mrb[0].mxu0
        %v934 = vadd.f32 %v854, %v933
        %v935 = vpop.f32.mrb[0].mxu0
        %936 = vdwg.mxu0
        %v937 = vmul.f32 %v929, 0.01
        %v938 = vmul.f32 %v934, 0.01
        %v939 = vmax.f32 %v929, %v937
        %v940 = vmax.f32 %v934, %v938
        %s941 = scalar_lea.vmem %s3, 80
        %v942 = vld [vmem:[%s941] sm:$0xff]
        %v943 = vld [vmem:[%s941 + $0x8] sm:$0xff]
        %s944 = scalar_lea.vmem %s4, 80
        %v945 = vld [vmem:[%s944] sm:$0xff]
        %v946 = vld [vmem:[%s944 + $0x8] sm:$0xff]
        %948 = vset.pattern.permute.xlu0 0
        %949 = vperm.xlu0 %948, %v945
        %v950 = vpop.permute.xlu0 %949
        %953 = vset.pattern.permute.xlu0 0
        %954 = vperm.xlu0 %953, %v946
        %v955 = vpop.permute.xlu0 %954
        %v958 = vsel %vm326, %v942, 0
        %v961 = vsel %vm326, %v943, 0
        %963 = vmatprep.subr.mxu0 0.0
        %964 = vmatpush1.msra.mxu0 %v939
        %965 = vmatprep.subr.mxu0 0.0
        %966 = vmatpush1.msra.mxu0 %v940
        %967 = vmatprep.subr.mxu0 0.0
        %968 = vmatpush1.msra.mxu0 0.0
        %969 = vmatprep.subr.mxu0 0.0
        %970 = vmatpush1.msra.mxu0 0.0
        %971 = vmatprep.subr.mxu0 0.0
        %972 = vmatpush1.msra.mxu0 0.0
        %973 = vmatprep.subr.mxu0 0.0
        %974 = vmatpush1.msra.mxu0 0.0
        %975 = vmatprep.subr.mxu0 0.0
        %976 = vmatpush1.msra.mxu0 0.0
        %977 = vmatprep.subr.mxu0 0.0
        %978 = vmatpush1.msra.mxu0 0.0
        %979 = vmatprep.subr.mxu0 0.0
        %980 = vmatpush1.msra.mxu0 0.0
        %981 = vmatprep.subr.mxu0 0.0
        %982 = vmatpush1.msra.mxu0 0.0
        %983 = vmatprep.subr.mxu0 0.0
        %984 = vmatpush1.msra.mxu0 0.0
        %985 = vmatprep.subr.mxu0 0.0
        %986 = vmatpush1.msra.mxu0 0.0
        %987 = vmatprep.subr.mxu0 0.0
        %988 = vmatpush1.msra.mxu0 0.0
        %989 = vmatprep.subr.mxu0 0.0
        %990 = vmatpush1.msra.mxu0 0.0
        %991 = vmatprep.subr.mxu0 0.0
        %992 = vmatpush1.msra.mxu0 0.0
        %993 = vmatprep.subr.mxu0 0.0
        %994 = vmatpush1.msra.mxu0 0.0
        %995 = vmatprep.subr.mxu0 0.0
        %996 = vmatpush1.msra.mxu0 0.0
        %997 = vmatprep.subr.mxu0 0.0
        %998 = vmatpush1.msra.mxu0 0.0
        %999 = vmatprep.subr.mxu0 0.0
        %1000 = vmatpush1.msra.mxu0 0.0
        %1001 = vmatprep.subr.mxu0 0.0
        %1002 = vmatpush1.msra.mxu0 0.0
        %1003 = vmatprep.subr.mxu0 0.0
        %1004 = vmatpush1.msra.mxu0 0.0
        %1005 = vmatprep.subr.mxu0 0.0
        %1006 = vmatpush1.msra.mxu0 0.0
        %1007 = vmatprep.subr.mxu0 0.0
        %1008 = vmatpush1.msra.mxu0 0.0
        %1009 = vmatprep.subr.mxu0 0.0
        %1010 = vmatpush1.msra.mxu0 0.0
        %1011 = vmatprep.subr.mxu0 0.0
        %1012 = vmatpush1.msra.mxu0 0.0
        %1013 = vmatprep.subr.mxu0 0.0
        %1014 = vmatpush1.msra.mxu0 0.0
        %1015 = vmatprep.subr.mxu0 0.0
        %1016 = vmatpush1.msra.mxu0 0.0
        %1017 = vmatprep.subr.mxu0 0.0
        %1018 = vmatpush1.msra.mxu0 0.0
        %1019 = vmatprep.subr.mxu0 0.0
        %1020 = vmatpush1.msra.mxu0 0.0
        %1021 = vmatprep.subr.mxu0 0.0
        %1022 = vmatpush1.msra.mxu0 0.0
        %1023 = vmatprep.subr.mxu0 0.0
        %1024 = vmatpush1.msra.mxu0 0.0
        %1025 = vmatprep.subr.mxu0 0.0
        %1026 = vmatpush1.msra.mxu0 0.0
        %1027 = vmatprep.mubr.f32.mxu0 0.0
        %1028 = vmatmul.mubr.f32.gmra.mrb[0].mxu0 %v958
        %v1029 = vpop.f32.mrb[0].mxu0
        %v1030 = vadd.f32 %v950, %v1029
        %v1031 = vpop.f32.mrb[0].mxu0
        %1032 = vmatprep.mubr.f32.mxu0 0.0
        %1033 = vmatmul.mubr.f32.gmra.mrb[0].mxu0 %v961
        %v1034 = vpop.f32.mrb[0].mxu0
        %v1035 = vadd.f32 %v955, %v1034
        %v1036 = vpop.f32.mrb[0].mxu0
        %1037 = vdwg.mxu0
        %v1038 = vmul.f32 %v1030, 0.01
        %v1039 = vmul.f32 %v1035, 0.01
        %v1040 = vmax.f32 %v1030, %v1038
        %v1041 = vmax.f32 %v1035, %v1039
        %s1042 = scalar_lea.vmem %s5, 2
        %v1043 = vld [vmem:[%s1042] sm:$0x3]
        %s1044 = scalar_lea.vmem %s6, 2
        %v1045 = vld [vmem:[%s1044] sm:$0x3]
        %1047 = vset.pattern.permute.xlu0 0
        %1048 = vperm.xlu0 %1047, %v1045
        %v1049 = vpop.permute.xlu0 %1048
        %v1052 = vsel %vm326, %v1043, 0
        %1054 = vmatprep.subr.mxu0 0.0
        %1055 = vmatpush1.msra.mxu0 %v1040
        %1056 = vmatprep.subr.mxu0 0.0
        %1057 = vmatpush1.msra.mxu0 %v1041
        %1058 = vmatprep.subr.mxu0 0.0
        %1059 = vmatpush1.msra.mxu0 0.0
        %1060 = vmatprep.subr.mxu0 0.0
        %1061 = vmatpush1.msra.mxu0 0.0
        %1062 = vmatprep.subr.mxu0 0.0
        %1063 = vmatpush1.msra.mxu0 0.0
        %1064 = vmatprep.subr.mxu0 0.0
        %1065 = vmatpush1.msra.mxu0 0.0
        %1066 = vmatprep.subr.mxu0 0.0
        %1067 = vmatpush1.msra.mxu0 0.0
        %1068 = vmatprep.subr.mxu0 0.0
        %1069 = vmatpush1.msra.mxu0 0.0
        %1070 = vmatprep.subr.mxu0 0.0
        %1071 = vmatpush1.msra.mxu0 0.0
        %1072 = vmatprep.subr.mxu0 0.0
        %1073 = vmatpush1.msra.mxu0 0.0
        %1074 = vmatprep.subr.mxu0 0.0
        %1075 = vmatpush1.msra.mxu0 0.0
        %1076 = vmatprep.subr.mxu0 0.0
        %1077 = vmatpush1.msra.mxu0 0.0
        %1078 = vmatprep.subr.mxu0 0.0
        %1079 = vmatpush1.msra.mxu0 0.0
        %1080 = vmatprep.subr.mxu0 0.0
        %1081 = vmatpush1.msra.mxu0 0.0
        %1082 = vmatprep.subr.mxu0 0.0
        %1083 = vmatpush1.msra.mxu0 0.0
        %1084 = vmatprep.subr.mxu0 0.0
        %1085 = vmatpush1.msra.mxu0 0.0
        %1086 = vmatprep.subr.mxu0 0.0
        %1087 = vmatpush1.msra.mxu0 0.0
        %1088 = vmatprep.subr.mxu0 0.0
        %1089 = vmatpush1.msra.mxu0 0.0
        %1090 = vmatprep.subr.mxu0 0.0
        %1091 = vmatpush1.msra.mxu0 0.0
        %1092 = vmatprep.subr.mxu0 0.0
        %1093 = vmatpush1.msra.mxu0 0.0
        %1094 = vmatprep.subr.mxu0 0.0
        %1095 = vmatpush1.msra.mxu0 0.0
        %1096 = vmatprep.subr.mxu0 0.0
        %1097 = vmatpush1.msra.mxu0 0.0
        %1098 = vmatprep.subr.mxu0 0.0
        %1099 = vmatpush1.msra.mxu0 0.0
        %1100 = vmatprep.subr.mxu0 0.0
        %1101 = vmatpush1.msra.mxu0 0.0
        %1102 = vmatprep.subr.mxu0 0.0
        %1103 = vmatpush1.msra.mxu0 0.0
        %1104 = vmatprep.subr.mxu0 0.0
        %1105 = vmatpush1.msra.mxu0 0.0
        %1106 = vmatprep.subr.mxu0 0.0
        %1107 = vmatpush1.msra.mxu0 0.0
        %1108 = vmatprep.subr.mxu0 0.0
        %1109 = vmatpush1.msra.mxu0 0.0
        %1110 = vmatprep.subr.mxu0 0.0
        %1111 = vmatpush1.msra.mxu0 0.0
        %1112 = vmatprep.subr.mxu0 0.0
        %1113 = vmatpush1.msra.mxu0 0.0
        %1114 = vmatprep.subr.mxu0 0.0
        %1115 = vmatpush1.msra.mxu0 0.0
        %1116 = vmatprep.subr.mxu0 0.0
        %1117 = vmatpush1.msra.mxu0 0.0
        %1118 = vmatprep.mubr.f32.mxu0 0.0
        %1119 = vmatmul.mubr.f32.gmra.mrb[0].mxu0 %v1052
        %v1120 = vpop.f32.mrb[0].mxu0
        %v1121 = vadd.f32 %v1049, %v1120
        %v1122 = vpop.f32.mrb[0].mxu0
        %1123 = vdwg.mxu0
        %v1124 = vmul.f32 %v1121, 1.442695
        %v1125 = vpow.pop %v1124
        %v1126 = vmul.f32 %v274, %v1125
        %v1128 = vrot.slane %v1121, 1
        %v1130 = vadd.f32 %v1126, %v1128
        %s1131 = scalar_lea.vmem %s1, 32
        %v1132 = vld [vmem:[%s1131] sm:$0xff]
        %v1133 = vld [vmem:[%s1131 + $0x8] sm:$0xff]
        %1135 = vset.pattern.permute.xlu0 0
        %1136 = vperm.xlu0 %1135, %v1132
        %v1137 = vpop.permute.xlu0 %1136
        %1140 = vset.pattern.permute.xlu0 0
        %1141 = vperm.xlu0 %1140, %v1133
        %v1142 = vpop.permute.xlu0 %1141
        %v1144 = vlaneseq
        %v1145 = vshrl.u32 %v1144, 7
        %v1146 = vsub.s32 0, %v1145
        %v1147 = vrot.slane %v1130, %v1146
        %v1148 = vmul.f32 %v1137, %v1147
        %v1149 = vmul.f32 %v1142, %v1147
        %s1150 = scalar_lea.vmem %s2, 32
        %v1151 = vld [vmem:[%s1150] sm:$0xff]
        %v1152 = vld [vmem:[%s1150 + $0x8] sm:$0xff]
        %1154 = vset.pattern.permute.xlu0 0
        %1155 = vperm.xlu0 %1154, %v1151
        %v1156 = vpop.permute.xlu0 %1155
        %1159 = vset.pattern.permute.xlu0 0
        %1160 = vperm.xlu0 %1159, %v1152
        %v1161 = vpop.permute.xlu0 %1160
        %v1163 = vadd.f32 %v1148, %v1156
        %v1164 = vadd.f32 %v1149, %v1161
        %v1165 = vmul.f32 %v1163, 0.01
        %v1166 = vmul.f32 %v1164, 0.01
        %v1167 = vmax.f32 %v1163, %v1165
        %v1168 = vmax.f32 %v1164, %v1166
        %s1169 = scalar_lea.vmem %s3, 96
        %v1170 = vld [vmem:[%s1169] sm:$0xff]
        %v1171 = vld [vmem:[%s1169 + $0x8] sm:$0xff]
        %s1172 = scalar_lea.vmem %s4, 96
        %v1173 = vld [vmem:[%s1172] sm:$0xff]
        %v1174 = vld [vmem:[%s1172 + $0x8] sm:$0xff]
        %1176 = vset.pattern.permute.xlu0 0
        %1177 = vperm.xlu0 %1176, %v1173
        %v1178 = vpop.permute.xlu0 %1177
        %1181 = vset.pattern.permute.xlu0 0
        %1182 = vperm.xlu0 %1181, %v1174
        %v1183 = vpop.permute.xlu0 %1182
        %v1186 = vsel %vm326, %v1170, 0
        %v1189 = vsel %vm326, %v1171, 0
        %1191 = vmatprep.subr.mxu0 0.0
        %1192 = vmatpush1.msra.mxu0 %v1167
        %1193 = vmatprep.subr.mxu0 0.0
        %1194 = vmatpush1.msra.mxu0 %v1168
        %1195 = vmatprep.subr.mxu0 0.0
        %1196 = vmatpush1.msra.mxu0 0.0
        %1197 = vmatprep.subr.mxu0 0.0
        %1198 = vmatpush1.msra.mxu0 0.0
        %1199 = vmatprep.subr.mxu0 0.0
        %1200 = vmatpush1.msra.mxu0 0.0
        %1201 = vmatprep.subr.mxu0 0.0
        %1202 = vmatpush1.msra.mxu0 0.0
        %1203 = vmatprep.subr.mxu0 0.0
        %1204 = vmatpush1.msra.mxu0 0.0
        %1205 = vmatprep.subr.mxu0 0.0
        %1206 = vmatpush1.msra.mxu0 0.0
        %1207 = vmatprep.subr.mxu0 0.0
        %1208 = vmatpush1.msra.mxu0 0.0
        %1209 = vmatprep.subr.mxu0 0.0
        %1210 = vmatpush1.msra.mxu0 0.0
        %1211 = vmatprep.subr.mxu0 0.0
        %1212 = vmatpush1.msra.mxu0 0.0
        %1213 = vmatprep.subr.mxu0 0.0
        %1214 = vmatpush1.msra.mxu0 0.0
        %1215 = vmatprep.subr.mxu0 0.0
        %1216 = vmatpush1.msra.mxu0 0.0
        %1217 = vmatprep.subr.mxu0 0.0
        %1218 = vmatpush1.msra.mxu0 0.0
        %1219 = vmatprep.subr.mxu0 0.0
        %1220 = vmatpush1.msra.mxu0 0.0
        %1221 = vmatprep.subr.mxu0 0.0
        %1222 = vmatpush1.msra.mxu0 0.0
        %1223 = vmatprep.subr.mxu0 0.0
        %1224 = vmatpush1.msra.mxu0 0.0
        %1225 = vmatprep.subr.mxu0 0.0
        %1226 = vmatpush1.msra.mxu0 0.0
        %1227 = vmatprep.subr.mxu0 0.0
        %1228 = vmatpush1.msra.mxu0 0.0
        %1229 = vmatprep.subr.mxu0 0.0
        %1230 = vmatpush1.msra.mxu0 0.0
        %1231 = vmatprep.subr.mxu0 0.0
        %1232 = vmatpush1.msra.mxu0 0.0
        %1233 = vmatprep.subr.mxu0 0.0
        %1234 = vmatpush1.msra.mxu0 0.0
        %1235 = vmatprep.subr.mxu0 0.0
        %1236 = vmatpush1.msra.mxu0 0.0
        %1237 = vmatprep.subr.mxu0 0.0
        %1238 = vmatpush1.msra.mxu0 0.0
        %1239 = vmatprep.subr.mxu0 0.0
        %1240 = vmatpush1.msra.mxu0 0.0
        %1241 = vmatprep.subr.mxu0 0.0
        %1242 = vmatpush1.msra.mxu0 0.0
        %1243 = vmatprep.subr.mxu0 0.0
        %1244 = vmatpush1.msra.mxu0 0.0
        %1245 = vmatprep.subr.mxu0 0.0
        %1246 = vmatpush1.msra.mxu0 0.0
        %1247 = vmatprep.subr.mxu0 0.0
        %1248 = vmatpush1.msra.mxu0 0.0
        %1249 = vmatprep.subr.mxu0 0.0
        %1250 = vmatpush1.msra.mxu0 0.0
        %1251 = vmatprep.subr.mxu0 0.0
        %1252 = vmatpush1.msra.mxu0 0.0
        %1253 = vmatprep.subr.mxu0 0.0
        %1254 = vmatpush1.msra.mxu0 0.0
        %1255 = vmatprep.mubr.f32.mxu0 0.0
        %1256 = vmatmul.mubr.f32.gmra.mrb[0].mxu0 %v1186
        %v1257 = vpop.f32.mrb[0].mxu0
        %v1258 = vadd.f32 %v1178, %v1257
        %v1259 = vpop.f32.mrb[0].mxu0
        %1260 = vmatprep.mubr.f32.mxu0 0.0
        %1261 = vmatmul.mubr.f32.gmra.mrb[0].mxu0 %v1189
        %v1262 = vpop.f32.mrb[0].mxu0
        %v1263 = vadd.f32 %v1183, %v1262
        %v1264 = vpop.f32.mrb[0].mxu0
        %1265 = vdwg.mxu0
        %v1266 = vmul.f32 %v1258, 0.01
        %v1267 = vmul.f32 %v1263, 0.01
        %v1268 = vmax.f32 %v1258, %v1266
        %v1269 = vmax.f32 %v1263, %v1267
        %s1270 = scalar_lea.vmem %s3, 112
        %v1271 = vld [vmem:[%s1270] sm:$0xff]
        %v1272 = vld [vmem:[%s1270 + $0x8] sm:$0xff]
        %s1273 = scalar_lea.vmem %s4, 112
        %v1274 = vld [vmem:[%s1273] sm:$0xff]
        %v1275 = vld [vmem:[%s1273 + $0x8] sm:$0xff]
        %1277 = vset.pattern.permute.xlu0 0
        %1278 = vperm.xlu0 %1277, %v1274
        %v1279 = vpop.permute.xlu0 %1278
        %1282 = vset.pattern.permute.xlu0 0
        %1283 = vperm.xlu0 %1282, %v1275
        %v1284 = vpop.permute.xlu0 %1283
        %v1287 = vsel %vm326, %v1271, 0
        %v1290 = vsel %vm326, %v1272, 0
        %1292 = vmatprep.subr.mxu0 0.0
        %1293 = vmatpush1.msra.mxu0 %v1268
        %1294 = vmatprep.subr.mxu0 0.0
        %1295 = vmatpush1.msra.mxu0 %v1269
        %1296 = vmatprep.subr.mxu0 0.0
        %1297 = vmatpush1.msra.mxu0 0.0
        %1298 = vmatprep.subr.mxu0 0.0
        %1299 = vmatpush1.msra.mxu0 0.0
        %1300 = vmatprep.subr.mxu0 0.0
        %1301 = vmatpush1.msra.mxu0 0.0
        %1302 = vmatprep.subr.mxu0 0.0
        %1303 = vmatpush1.msra.mxu0 0.0
        %1304 = vmatprep.subr.mxu0 0.0
        %1305 = vmatpush1.msra.mxu0 0.0
        %1306 = vmatprep.subr.mxu0 0.0
        %1307 = vmatpush1.msra.mxu0 0.0
        %1308 = vmatprep.subr.mxu0 0.0
        %1309 = vmatpush1.msra.mxu0 0.0
        %1310 = vmatprep.subr.mxu0 0.0
        %1311 = vmatpush1.msra.mxu0 0.0
        %1312 = vmatprep.subr.mxu0 0.0
        %1313 = vmatpush1.msra.mxu0 0.0
        %1314 = vmatprep.subr.mxu0 0.0
        %1315 = vmatpush1.msra.mxu0 0.0
        %1316 = vmatprep.subr.mxu0 0.0
        %1317 = vmatpush1.msra.mxu0 0.0
        %1318 = vmatprep.subr.mxu0 0.0
        %1319 = vmatpush1.msra.mxu0 0.0
        %1320 = vmatprep.subr.mxu0 0.0
        %1321 = vmatpush1.msra.mxu0 0.0
        %1322 = vmatprep.subr.mxu0 0.0
        %1323 = vmatpush1.msra.mxu0 0.0
        %1324 = vmatprep.subr.mxu0 0.0
        %1325 = vmatpush1.msra.mxu0 0.0
        %1326 = vmatprep.subr.mxu0 0.0
        %1327 = vmatpush1.msra.mxu0 0.0
        %1328 = vmatprep.subr.mxu0 0.0
        %1329 = vmatpush1.msra.mxu0 0.0
        %1330 = vmatprep.subr.mxu0 0.0
        %1331 = vmatpush1.msra.mxu0 0.0
        %1332 = vmatprep.subr.mxu0 0.0
        %1333 = vmatpush1.msra.mxu0 0.0
        %1334 = vmatprep.subr.mxu0 0.0
        %1335 = vmatpush1.msra.mxu0 0.0
        %1336 = vmatprep.subr.mxu0 0.0
        %1337 = vmatpush1.msra.mxu0 0.0
        %1338 = vmatprep.subr.mxu0 0.0
        %1339 = vmatpush1.msra.mxu0 0.0
        %1340 = vmatprep.subr.mxu0 0.0
        %1341 = vmatpush1.msra.mxu0 0.0
        %1342 = vmatprep.subr.mxu0 0.0
        %1343 = vmatpush1.msra.mxu0 0.0
        %1344 = vmatprep.subr.mxu0 0.0
        %1345 = vmatpush1.msra.mxu0 0.0
        %1346 = vmatprep.subr.mxu0 0.0
        %1347 = vmatpush1.msra.mxu0 0.0
        %1348 = vmatprep.subr.mxu0 0.0
        %1349 = vmatpush1.msra.mxu0 0.0
        %1350 = vmatprep.subr.mxu0 0.0
        %1351 = vmatpush1.msra.mxu0 0.0
        %1352 = vmatprep.subr.mxu0 0.0
        %1353 = vmatpush1.msra.mxu0 0.0
        %1354 = vmatprep.subr.mxu0 0.0
        %1355 = vmatpush1.msra.mxu0 0.0
        %1356 = vmatprep.mubr.f32.mxu0 0.0
        %1357 = vmatmul.mubr.f32.gmra.mrb[0].mxu0 %v1287
        %v1358 = vpop.f32.mrb[0].mxu0
        %v1359 = vadd.f32 %v1279, %v1358
        %v1360 = vpop.f32.mrb[0].mxu0
        %1361 = vmatprep.mubr.f32.mxu0 0.0
        %1362 = vmatmul.mubr.f32.gmra.mrb[0].mxu0 %v1290
        %v1363 = vpop.f32.mrb[0].mxu0
        %v1364 = vadd.f32 %v1284, %v1363
        %v1365 = vpop.f32.mrb[0].mxu0
        %1366 = vdwg.mxu0
        %v1367 = vmul.f32 %v1359, 0.01
        %v1368 = vmul.f32 %v1364, 0.01
        %v1369 = vmax.f32 %v1359, %v1367
        %v1370 = vmax.f32 %v1364, %v1368
        %s1371 = scalar_lea.vmem %s3, 128
        %v1372 = vld [vmem:[%s1371] sm:$0xff]
        %v1373 = vld [vmem:[%s1371 + $0x8] sm:$0xff]
        %s1374 = scalar_lea.vmem %s4, 128
        %v1375 = vld [vmem:[%s1374] sm:$0xff]
        %v1376 = vld [vmem:[%s1374 + $0x8] sm:$0xff]
        %1378 = vset.pattern.permute.xlu0 0
        %1379 = vperm.xlu0 %1378, %v1375
        %v1380 = vpop.permute.xlu0 %1379
        %1383 = vset.pattern.permute.xlu0 0
        %1384 = vperm.xlu0 %1383, %v1376
        %v1385 = vpop.permute.xlu0 %1384
        %v1388 = vsel %vm326, %v1372, 0
        %v1391 = vsel %vm326, %v1373, 0
        %1393 = vmatprep.subr.mxu0 0.0
        %1394 = vmatpush1.msra.mxu0 %v1369
        %1395 = vmatprep.subr.mxu0 0.0
        %1396 = vmatpush1.msra.mxu0 %v1370
        %1397 = vmatprep.subr.mxu0 0.0
        %1398 = vmatpush1.msra.mxu0 0.0
        %1399 = vmatprep.subr.mxu0 0.0
        %1400 = vmatpush1.msra.mxu0 0.0
        %1401 = vmatprep.subr.mxu0 0.0
        %1402 = vmatpush1.msra.mxu0 0.0
        %1403 = vmatprep.subr.mxu0 0.0
        %1404 = vmatpush1.msra.mxu0 0.0
        %1405 = vmatprep.subr.mxu0 0.0
        %1406 = vmatpush1.msra.mxu0 0.0
        %1407 = vmatprep.subr.mxu0 0.0
        %1408 = vmatpush1.msra.mxu0 0.0
        %1409 = vmatprep.subr.mxu0 0.0
        %1410 = vmatpush1.msra.mxu0 0.0
        %1411 = vmatprep.subr.mxu0 0.0
        %1412 = vmatpush1.msra.mxu0 0.0
        %1413 = vmatprep.subr.mxu0 0.0
        %1414 = vmatpush1.msra.mxu0 0.0
        %1415 = vmatprep.subr.mxu0 0.0
        %1416 = vmatpush1.msra.mxu0 0.0
        %1417 = vmatprep.subr.mxu0 0.0
        %1418 = vmatpush1.msra.mxu0 0.0
        %1419 = vmatprep.subr.mxu0 0.0
        %1420 = vmatpush1.msra.mxu0 0.0
        %1421 = vmatprep.subr.mxu0 0.0
        %1422 = vmatpush1.msra.mxu0 0.0
        %1423 = vmatprep.subr.mxu0 0.0
        %1424 = vmatpush1.msra.mxu0 0.0
        %1425 = vmatprep.subr.mxu0 0.0
        %1426 = vmatpush1.msra.mxu0 0.0
        %1427 = vmatprep.subr.mxu0 0.0
        %1428 = vmatpush1.msra.mxu0 0.0
        %1429 = vmatprep.subr.mxu0 0.0
        %1430 = vmatpush1.msra.mxu0 0.0
        %1431 = vmatprep.subr.mxu0 0.0
        %1432 = vmatpush1.msra.mxu0 0.0
        %1433 = vmatprep.subr.mxu0 0.0
        %1434 = vmatpush1.msra.mxu0 0.0
        %1435 = vmatprep.subr.mxu0 0.0
        %1436 = vmatpush1.msra.mxu0 0.0
        %1437 = vmatprep.subr.mxu0 0.0
        %1438 = vmatpush1.msra.mxu0 0.0
        %1439 = vmatprep.subr.mxu0 0.0
        %1440 = vmatpush1.msra.mxu0 0.0
        %1441 = vmatprep.subr.mxu0 0.0
        %1442 = vmatpush1.msra.mxu0 0.0
        %1443 = vmatprep.subr.mxu0 0.0
        %1444 = vmatpush1.msra.mxu0 0.0
        %1445 = vmatprep.subr.mxu0 0.0
        %1446 = vmatpush1.msra.mxu0 0.0
        %1447 = vmatprep.subr.mxu0 0.0
        %1448 = vmatpush1.msra.mxu0 0.0
        %1449 = vmatprep.subr.mxu0 0.0
        %1450 = vmatpush1.msra.mxu0 0.0
        %1451 = vmatprep.subr.mxu0 0.0
        %1452 = vmatpush1.msra.mxu0 0.0
        %1453 = vmatprep.subr.mxu0 0.0
        %1454 = vmatpush1.msra.mxu0 0.0
        %1455 = vmatprep.subr.mxu0 0.0
        %1456 = vmatpush1.msra.mxu0 0.0
        %1457 = vmatprep.mubr.f32.mxu0 0.0
        %1458 = vmatmul.mubr.f32.gmra.mrb[0].mxu0 %v1388
        %v1459 = vpop.f32.mrb[0].mxu0
        %v1460 = vadd.f32 %v1380, %v1459
        %v1461 = vpop.f32.mrb[0].mxu0
        %1462 = vmatprep.mubr.f32.mxu0 0.0
        %1463 = vmatmul.mubr.f32.gmra.mrb[0].mxu0 %v1391
        %v1464 = vpop.f32.mrb[0].mxu0
        %v1465 = vadd.f32 %v1385, %v1464
        %v1466 = vpop.f32.mrb[0].mxu0
        %1467 = vdwg.mxu0
        %v1468 = vmul.f32 %v1460, 0.01
        %v1469 = vmul.f32 %v1465, 0.01
        %v1470 = vmax.f32 %v1460, %v1468
        %v1471 = vmax.f32 %v1465, %v1469
        %s1472 = scalar_lea.vmem %s5, 4
        %v1473 = vld [vmem:[%s1472] sm:$0x3]
        %s1474 = scalar_lea.vmem %s6, 4
        %v1475 = vld [vmem:[%s1474] sm:$0x3]
        %1477 = vset.pattern.permute.xlu0 0
        %1478 = vperm.xlu0 %1477, %v1475
        %v1479 = vpop.permute.xlu0 %1478
        %v1482 = vsel %vm326, %v1473, 0
        %1484 = vmatprep.subr.mxu0 0.0
        %1485 = vmatpush1.msra.mxu0 %v1470
        %1486 = vmatprep.subr.mxu0 0.0
        %1487 = vmatpush1.msra.mxu0 %v1471
        %1488 = vmatprep.subr.mxu0 0.0
        %1489 = vmatpush1.msra.mxu0 0.0
        %1490 = vmatprep.subr.mxu0 0.0
        %1491 = vmatpush1.msra.mxu0 0.0
        %1492 = vmatprep.subr.mxu0 0.0
        %1493 = vmatpush1.msra.mxu0 0.0
        %1494 = vmatprep.subr.mxu0 0.0
        %1495 = vmatpush1.msra.mxu0 0.0
        %1496 = vmatprep.subr.mxu0 0.0
        %1497 = vmatpush1.msra.mxu0 0.0
        %1498 = vmatprep.subr.mxu0 0.0
        %1499 = vmatpush1.msra.mxu0 0.0
        %1500 = vmatprep.subr.mxu0 0.0
        %1501 = vmatpush1.msra.mxu0 0.0
        %1502 = vmatprep.subr.mxu0 0.0
        %1503 = vmatpush1.msra.mxu0 0.0
        %1504 = vmatprep.subr.mxu0 0.0
        %1505 = vmatpush1.msra.mxu0 0.0
        %1506 = vmatprep.subr.mxu0 0.0
        %1507 = vmatpush1.msra.mxu0 0.0
        %1508 = vmatprep.subr.mxu0 0.0
        %1509 = vmatpush1.msra.mxu0 0.0
        %1510 = vmatprep.subr.mxu0 0.0
        %1511 = vmatpush1.msra.mxu0 0.0
        %1512 = vmatprep.subr.mxu0 0.0
        %1513 = vmatpush1.msra.mxu0 0.0
        %1514 = vmatprep.subr.mxu0 0.0
        %1515 = vmatpush1.msra.mxu0 0.0
        %1516 = vmatprep.subr.mxu0 0.0
        %1517 = vmatpush1.msra.mxu0 0.0
        %1518 = vmatprep.subr.mxu0 0.0
        %1519 = vmatpush1.msra.mxu0 0.0
        %1520 = vmatprep.subr.mxu0 0.0
        %1521 = vmatpush1.msra.mxu0 0.0
        %1522 = vmatprep.subr.mxu0 0.0
        %1523 = vmatpush1.msra.mxu0 0.0
        %1524 = vmatprep.subr.mxu0 0.0
        %1525 = vmatpush1.msra.mxu0 0.0
        %1526 = vmatprep.subr.mxu0 0.0
        %1527 = vmatpush1.msra.mxu0 0.0
        %1528 = vmatprep.subr.mxu0 0.0
        %1529 = vmatpush1.msra.mxu0 0.0
        %1530 = vmatprep.subr.mxu0 0.0
        %1531 = vmatpush1.msra.mxu0 0.0
        %1532 = vmatprep.subr.mxu0 0.0
        %1533 = vmatpush1.msra.mxu0 0.0
        %1534 = vmatprep.subr.mxu0 0.0
        %1535 = vmatpush1.msra.mxu0 0.0
        %1536 = vmatprep.subr.mxu0 0.0
        %1537 = vmatpush1.msra.mxu0 0.0
        %1538 = vmatprep.subr.mxu0 0.0
        %1539 = vmatpush1.msra.mxu0 0.0
        %1540 = vmatprep.subr.mxu0 0.0
        %1541 = vmatpush1.msra.mxu0 0.0
        %1542 = vmatprep.subr.mxu0 0.0
        %1543 = vmatpush1.msra.mxu0 0.0
        %1544 = vmatprep.subr.mxu0 0.0
        %1545 = vmatpush1.msra.mxu0 0.0
        %1546 = vmatprep.subr.mxu0 0.0
        %1547 = vmatpush1.msra.mxu0 0.0
        %1548 = vmatprep.mubr.f32.mxu0 0.0
        %1549 = vmatmul.mubr.f32.gmra.mrb[0].mxu0 %v1482
        %v1550 = vpop.f32.mrb[0].mxu0
        %v1551 = vadd.f32 %v1479, %v1550
        %v1552 = vpop.f32.mrb[0].mxu0
        %1553 = vdwg.mxu0
        %v1554 = vmul.f32 %v1551, 1.442695
        %v1555 = vpow.pop %v1554
        %v1556 = vmul.f32 %v700, %v1555
        %v1558 = vrot.slane %v1551, 1
        %v1560 = vadd.f32 %v1556, %v1558
        %s1561 = scalar_lea.vmem %s1, 48
        %v1562 = vld [vmem:[%s1561] sm:$0xff]
        %v1563 = vld [vmem:[%s1561 + $0x8] sm:$0xff]
        %1565 = vset.pattern.permute.xlu0 0
        %1566 = vperm.xlu0 %1565, %v1562
        %v1567 = vpop.permute.xlu0 %1566
        %1570 = vset.pattern.permute.xlu0 0
        %1571 = vperm.xlu0 %1570, %v1563
        %v1572 = vpop.permute.xlu0 %1571
        %v1574 = vlaneseq
        %v1575 = vshrl.u32 %v1574, 7
        %v1576 = vsub.s32 0, %v1575
        %v1577 = vrot.slane %v1560, %v1576
        %v1578 = vmul.f32 %v1567, %v1577
        %v1579 = vmul.f32 %v1572, %v1577
        %s1580 = scalar_lea.vmem %s2, 48
        %v1581 = vld [vmem:[%s1580] sm:$0xff]
        %v1582 = vld [vmem:[%s1580 + $0x8] sm:$0xff]
        %1584 = vset.pattern.permute.xlu0 0
        %1585 = vperm.xlu0 %1584, %v1581
        %v1586 = vpop.permute.xlu0 %1585
        %1589 = vset.pattern.permute.xlu0 0
        %1590 = vperm.xlu0 %1589, %v1582
        %v1591 = vpop.permute.xlu0 %1590
        %v1593 = vadd.f32 %v1578, %v1586
        %v1594 = vadd.f32 %v1579, %v1591
        %v1595 = vmul.f32 %v1593, 0.01
        %v1596 = vmul.f32 %v1594, 0.01
        %v1597 = vmax.f32 %v1593, %v1595
        %v1598 = vmax.f32 %v1594, %v1596
        %s1599 = scalar_lea.vmem %s3, 144
        %v1600 = vld [vmem:[%s1599] sm:$0xff]
        %v1601 = vld [vmem:[%s1599 + $0x8] sm:$0xff]
        %s1602 = scalar_lea.vmem %s4, 144
        %v1603 = vld [vmem:[%s1602] sm:$0xff]
        %v1604 = vld [vmem:[%s1602 + $0x8] sm:$0xff]
        %1606 = vset.pattern.permute.xlu0 0
        %1607 = vperm.xlu0 %1606, %v1603
        %v1608 = vpop.permute.xlu0 %1607
        %1611 = vset.pattern.permute.xlu0 0
        %1612 = vperm.xlu0 %1611, %v1604
        %v1613 = vpop.permute.xlu0 %1612
        %v1616 = vsel %vm326, %v1600, 0
        %v1619 = vsel %vm326, %v1601, 0
        %1621 = vmatprep.subr.mxu0 0.0
        %1622 = vmatpush1.msra.mxu0 %v1597
        %1623 = vmatprep.subr.mxu0 0.0
        %1624 = vmatpush1.msra.mxu0 %v1598
        %1625 = vmatprep.subr.mxu0 0.0
        %1626 = vmatpush1.msra.mxu0 0.0
        %1627 = vmatprep.subr.mxu0 0.0
        %1628 = vmatpush1.msra.mxu0 0.0
        %1629 = vmatprep.subr.mxu0 0.0
        %1630 = vmatpush1.msra.mxu0 0.0
        %1631 = vmatprep.subr.mxu0 0.0
        %1632 = vmatpush1.msra.mxu0 0.0
        %1633 = vmatprep.subr.mxu0 0.0
        %1634 = vmatpush1.msra.mxu0 0.0
        %1635 = vmatprep.subr.mxu0 0.0
        %1636 = vmatpush1.msra.mxu0 0.0
        %1637 = vmatprep.subr.mxu0 0.0
        %1638 = vmatpush1.msra.mxu0 0.0
        %1639 = vmatprep.subr.mxu0 0.0
        %1640 = vmatpush1.msra.mxu0 0.0
        %1641 = vmatprep.subr.mxu0 0.0
        %1642 = vmatpush1.msra.mxu0 0.0
        %1643 = vmatprep.subr.mxu0 0.0
        %1644 = vmatpush1.msra.mxu0 0.0
        %1645 = vmatprep.subr.mxu0 0.0
        %1646 = vmatpush1.msra.mxu0 0.0
        %1647 = vmatprep.subr.mxu0 0.0
        %1648 = vmatpush1.msra.mxu0 0.0
        %1649 = vmatprep.subr.mxu0 0.0
        %1650 = vmatpush1.msra.mxu0 0.0
        %1651 = vmatprep.subr.mxu0 0.0
        %1652 = vmatpush1.msra.mxu0 0.0
        %1653 = vmatprep.subr.mxu0 0.0
        %1654 = vmatpush1.msra.mxu0 0.0
        %1655 = vmatprep.subr.mxu0 0.0
        %1656 = vmatpush1.msra.mxu0 0.0
        %1657 = vmatprep.subr.mxu0 0.0
        %1658 = vmatpush1.msra.mxu0 0.0
        %1659 = vmatprep.subr.mxu0 0.0
        %1660 = vmatpush1.msra.mxu0 0.0
        %1661 = vmatprep.subr.mxu0 0.0
        %1662 = vmatpush1.msra.mxu0 0.0
        %1663 = vmatprep.subr.mxu0 0.0
        %1664 = vmatpush1.msra.mxu0 0.0
        %1665 = vmatprep.subr.mxu0 0.0
        %1666 = vmatpush1.msra.mxu0 0.0
        %1667 = vmatprep.subr.mxu0 0.0
        %1668 = vmatpush1.msra.mxu0 0.0
        %1669 = vmatprep.subr.mxu0 0.0
        %1670 = vmatpush1.msra.mxu0 0.0
        %1671 = vmatprep.subr.mxu0 0.0
        %1672 = vmatpush1.msra.mxu0 0.0
        %1673 = vmatprep.subr.mxu0 0.0
        %1674 = vmatpush1.msra.mxu0 0.0
        %1675 = vmatprep.subr.mxu0 0.0
        %1676 = vmatpush1.msra.mxu0 0.0
        %1677 = vmatprep.subr.mxu0 0.0
        %1678 = vmatpush1.msra.mxu0 0.0
        %1679 = vmatprep.subr.mxu0 0.0
        %1680 = vmatpush1.msra.mxu0 0.0
        %1681 = vmatprep.subr.mxu0 0.0
        %1682 = vmatpush1.msra.mxu0 0.0
        %1683 = vmatprep.subr.mxu0 0.0
        %1684 = vmatpush1.msra.mxu0 0.0
        %1685 = vmatprep.mubr.f32.mxu0 0.0
        %1686 = vmatmul.mubr.f32.gmra.mrb[0].mxu0 %v1616
        %v1687 = vpop.f32.mrb[0].mxu0
        %v1688 = vadd.f32 %v1608, %v1687
        %v1689 = vpop.f32.mrb[0].mxu0
        %1690 = vmatprep.mubr.f32.mxu0 0.0
        %1691 = vmatmul.mubr.f32.gmra.mrb[0].mxu0 %v1619
        %v1692 = vpop.f32.mrb[0].mxu0
        %v1693 = vadd.f32 %v1613, %v1692
        %v1694 = vpop.f32.mrb[0].mxu0
        %1695 = vdwg.mxu0
        %v1696 = vmul.f32 %v1688, 0.01
        %v1697 = vmul.f32 %v1693, 0.01
        %v1698 = vmax.f32 %v1688, %v1696
        %v1699 = vmax.f32 %v1693, %v1697
        %s1700 = scalar_lea.vmem %s3, 160
        %v1701 = vld [vmem:[%s1700] sm:$0xff]
        %v1702 = vld [vmem:[%s1700 + $0x8] sm:$0xff]
        %s1703 = scalar_lea.vmem %s4, 160
        %v1704 = vld [vmem:[%s1703] sm:$0xff]
        %v1705 = vld [vmem:[%s1703 + $0x8] sm:$0xff]
        %1707 = vset.pattern.permute.xlu0 0
        %1708 = vperm.xlu0 %1707, %v1704
        %v1709 = vpop.permute.xlu0 %1708
        %1712 = vset.pattern.permute.xlu0 0
        %1713 = vperm.xlu0 %1712, %v1705
        %v1714 = vpop.permute.xlu0 %1713
        %v1717 = vsel %vm326, %v1701, 0
        %v1720 = vsel %vm326, %v1702, 0
        %1722 = vmatprep.subr.mxu0 0.0
        %1723 = vmatpush1.msra.mxu0 %v1698
        %1724 = vmatprep.subr.mxu0 0.0
        %1725 = vmatpush1.msra.mxu0 %v1699
        %1726 = vmatprep.subr.mxu0 0.0
        %1727 = vmatpush1.msra.mxu0 0.0
        %1728 = vmatprep.subr.mxu0 0.0
        %1729 = vmatpush1.msra.mxu0 0.0
        %1730 = vmatprep.subr.mxu0 0.0
        %1731 = vmatpush1.msra.mxu0 0.0
        %1732 = vmatprep.subr.mxu0 0.0
        %1733 = vmatpush1.msra.mxu0 0.0
        %1734 = vmatprep.subr.mxu0 0.0
        %1735 = vmatpush1.msra.mxu0 0.0
        %1736 = vmatprep.subr.mxu0 0.0
        %1737 = vmatpush1.msra.mxu0 0.0
        %1738 = vmatprep.subr.mxu0 0.0
        %1739 = vmatpush1.msra.mxu0 0.0
        %1740 = vmatprep.subr.mxu0 0.0
        %1741 = vmatpush1.msra.mxu0 0.0
        %1742 = vmatprep.subr.mxu0 0.0
        %1743 = vmatpush1.msra.mxu0 0.0
        %1744 = vmatprep.subr.mxu0 0.0
        %1745 = vmatpush1.msra.mxu0 0.0
        %1746 = vmatprep.subr.mxu0 0.0
        %1747 = vmatpush1.msra.mxu0 0.0
        %1748 = vmatprep.subr.mxu0 0.0
        %1749 = vmatpush1.msra.mxu0 0.0
        %1750 = vmatprep.subr.mxu0 0.0
        %1751 = vmatpush1.msra.mxu0 0.0
        %1752 = vmatprep.subr.mxu0 0.0
        %1753 = vmatpush1.msra.mxu0 0.0
        %1754 = vmatprep.subr.mxu0 0.0
        %1755 = vmatpush1.msra.mxu0 0.0
        %1756 = vmatprep.subr.mxu0 0.0
        %1757 = vmatpush1.msra.mxu0 0.0
        %1758 = vmatprep.subr.mxu0 0.0
        %1759 = vmatpush1.msra.mxu0 0.0
        %1760 = vmatprep.subr.mxu0 0.0
        %1761 = vmatpush1.msra.mxu0 0.0
        %1762 = vmatprep.subr.mxu0 0.0
        %1763 = vmatpush1.msra.mxu0 0.0
        %1764 = vmatprep.subr.mxu0 0.0
        %1765 = vmatpush1.msra.mxu0 0.0
        %1766 = vmatprep.subr.mxu0 0.0
        %1767 = vmatpush1.msra.mxu0 0.0
        %1768 = vmatprep.subr.mxu0 0.0
        %1769 = vmatpush1.msra.mxu0 0.0
        %1770 = vmatprep.subr.mxu0 0.0
        %1771 = vmatpush1.msra.mxu0 0.0
        %1772 = vmatprep.subr.mxu0 0.0
        %1773 = vmatpush1.msra.mxu0 0.0
        %1774 = vmatprep.subr.mxu0 0.0
        %1775 = vmatpush1.msra.mxu0 0.0
        %1776 = vmatprep.subr.mxu0 0.0
        %1777 = vmatpush1.msra.mxu0 0.0
        %1778 = vmatprep.subr.mxu0 0.0
        %1779 = vmatpush1.msra.mxu0 0.0
        %1780 = vmatprep.subr.mxu0 0.0
        %1781 = vmatpush1.msra.mxu0 0.0
        %1782 = vmatprep.subr.mxu0 0.0
        %1783 = vmatpush1.msra.mxu0 0.0
        %1784 = vmatprep.subr.mxu0 0.0
        %1785 = vmatpush1.msra.mxu0 0.0
        %1786 = vmatprep.mubr.f32.mxu0 0.0
        %1787 = vmatmul.mubr.f32.gmra.mrb[0].mxu0 %v1717
        %v1788 = vpop.f32.mrb[0].mxu0
        %v1789 = vadd.f32 %v1709, %v1788
        %v1790 = vpop.f32.mrb[0].mxu0
        %1791 = vmatprep.mubr.f32.mxu0 0.0
        %1792 = vmatmul.mubr.f32.gmra.mrb[0].mxu0 %v1720
        %v1793 = vpop.f32.mrb[0].mxu0
        %v1794 = vadd.f32 %v1714, %v1793
        %v1795 = vpop.f32.mrb[0].mxu0
        %1796 = vdwg.mxu0
        %v1797 = vmul.f32 %v1789, 0.01
        %v1798 = vmul.f32 %v1794, 0.01
        %v1799 = vmax.f32 %v1789, %v1797
        %v1800 = vmax.f32 %v1794, %v1798
        %s1801 = scalar_lea.vmem %s3, 176
        %v1802 = vld [vmem:[%s1801] sm:$0xff]
        %v1803 = vld [vmem:[%s1801 + $0x8] sm:$0xff]
        %s1804 = scalar_lea.vmem %s4, 176
        %v1805 = vld [vmem:[%s1804] sm:$0xff]
        %v1806 = vld [vmem:[%s1804 + $0x8] sm:$0xff]
        %1808 = vset.pattern.permute.xlu0 0
        %1809 = vperm.xlu0 %1808, %v1805
        %v1810 = vpop.permute.xlu0 %1809
        %1813 = vset.pattern.permute.xlu0 0
        %1814 = vperm.xlu0 %1813, %v1806
        %v1815 = vpop.permute.xlu0 %1814
        %v1818 = vsel %vm326, %v1802, 0
        %v1821 = vsel %vm326, %v1803, 0
        %1823 = vmatprep.subr.mxu0 0.0
        %1824 = vmatpush1.msra.mxu0 %v1799
        %1825 = vmatprep.subr.mxu0 0.0
        %1826 = vmatpush1.msra.mxu0 %v1800
        %1827 = vmatprep.subr.mxu0 0.0
        %1828 = vmatpush1.msra.mxu0 0.0
        %1829 = vmatprep.subr.mxu0 0.0
        %1830 = vmatpush1.msra.mxu0 0.0
        %1831 = vmatprep.subr.mxu0 0.0
        %1832 = vmatpush1.msra.mxu0 0.0
        %1833 = vmatprep.subr.mxu0 0.0
        %1834 = vmatpush1.msra.mxu0 0.0
        %1835 = vmatprep.subr.mxu0 0.0
        %1836 = vmatpush1.msra.mxu0 0.0
        %1837 = vmatprep.subr.mxu0 0.0
        %1838 = vmatpush1.msra.mxu0 0.0
        %1839 = vmatprep.subr.mxu0 0.0
        %1840 = vmatpush1.msra.mxu0 0.0
        %1841 = vmatprep.subr.mxu0 0.0
        %1842 = vmatpush1.msra.mxu0 0.0
        %1843 = vmatprep.subr.mxu0 0.0
        %1844 = vmatpush1.msra.mxu0 0.0
        %1845 = vmatprep.subr.mxu0 0.0
        %1846 = vmatpush1.msra.mxu0 0.0
        %1847 = vmatprep.subr.mxu0 0.0
        %1848 = vmatpush1.msra.mxu0 0.0
        %1849 = vmatprep.subr.mxu0 0.0
        %1850 = vmatpush1.msra.mxu0 0.0
        %1851 = vmatprep.subr.mxu0 0.0
        %1852 = vmatpush1.msra.mxu0 0.0
        %1853 = vmatprep.subr.mxu0 0.0
        %1854 = vmatpush1.msra.mxu0 0.0
        %1855 = vmatprep.subr.mxu0 0.0
        %1856 = vmatpush1.msra.mxu0 0.0
        %1857 = vmatprep.subr.mxu0 0.0
        %1858 = vmatpush1.msra.mxu0 0.0
        %1859 = vmatprep.subr.mxu0 0.0
        %1860 = vmatpush1.msra.mxu0 0.0
        %1861 = vmatprep.subr.mxu0 0.0
        %1862 = vmatpush1.msra.mxu0 0.0
        %1863 = vmatprep.subr.mxu0 0.0
        %1864 = vmatpush1.msra.mxu0 0.0
        %1865 = vmatprep.subr.mxu0 0.0
        %1866 = vmatpush1.msra.mxu0 0.0
        %1867 = vmatprep.subr.mxu0 0.0
        %1868 = vmatpush1.msra.mxu0 0.0
        %1869 = vmatprep.subr.mxu0 0.0
        %1870 = vmatpush1.msra.mxu0 0.0
        %1871 = vmatprep.subr.mxu0 0.0
        %1872 = vmatpush1.msra.mxu0 0.0
        %1873 = vmatprep.subr.mxu0 0.0
        %1874 = vmatpush1.msra.mxu0 0.0
        %1875 = vmatprep.subr.mxu0 0.0
        %1876 = vmatpush1.msra.mxu0 0.0
        %1877 = vmatprep.subr.mxu0 0.0
        %1878 = vmatpush1.msra.mxu0 0.0
        %1879 = vmatprep.subr.mxu0 0.0
        %1880 = vmatpush1.msra.mxu0 0.0
        %1881 = vmatprep.subr.mxu0 0.0
        %1882 = vmatpush1.msra.mxu0 0.0
        %1883 = vmatprep.subr.mxu0 0.0
        %1884 = vmatpush1.msra.mxu0 0.0
        %1885 = vmatprep.subr.mxu0 0.0
        %1886 = vmatpush1.msra.mxu0 0.0
        %1887 = vmatprep.mubr.f32.mxu0 0.0
        %1888 = vmatmul.mubr.f32.gmra.mrb[0].mxu0 %v1818
        %v1889 = vpop.f32.mrb[0].mxu0
        %v1890 = vadd.f32 %v1810, %v1889
        %v1891 = vpop.f32.mrb[0].mxu0
        %1892 = vmatprep.mubr.f32.mxu0 0.0
        %1893 = vmatmul.mubr.f32.gmra.mrb[0].mxu0 %v1821
        %v1894 = vpop.f32.mrb[0].mxu0
        %v1895 = vadd.f32 %v1815, %v1894
        %v1896 = vpop.f32.mrb[0].mxu0
        %1897 = vdwg.mxu0
        %v1898 = vmul.f32 %v1890, 0.01
        %v1899 = vmul.f32 %v1895, 0.01
        %v1900 = vmax.f32 %v1890, %v1898
        %v1901 = vmax.f32 %v1895, %v1899
        %s1902 = scalar_lea.vmem %s5, 6
        %v1903 = vld [vmem:[%s1902] sm:$0x3]
        %s1904 = scalar_lea.vmem %s6, 6
        %v1905 = vld [vmem:[%s1904] sm:$0x3]
        %1907 = vset.pattern.permute.xlu0 0
        %1908 = vperm.xlu0 %1907, %v1905
        %v1909 = vpop.permute.xlu0 %1908
        %v1912 = vsel %vm326, %v1903, 0
        %1914 = vmatprep.subr.mxu0 0.0
        %1915 = vmatpush1.msra.mxu0 %v1900
        %1916 = vmatprep.subr.mxu0 0.0
        %1917 = vmatpush1.msra.mxu0 %v1901
        %1918 = vmatprep.subr.mxu0 0.0
        %1919 = vmatpush1.msra.mxu0 0.0
        %1920 = vmatprep.subr.mxu0 0.0
        %1921 = vmatpush1.msra.mxu0 0.0
        %1922 = vmatprep.subr.mxu0 0.0
        %1923 = vmatpush1.msra.mxu0 0.0
        %1924 = vmatprep.subr.mxu0 0.0
        %1925 = vmatpush1.msra.mxu0 0.0
        %1926 = vmatprep.subr.mxu0 0.0
        %1927 = vmatpush1.msra.mxu0 0.0
        %1928 = vmatprep.subr.mxu0 0.0
        %1929 = vmatpush1.msra.mxu0 0.0
        %1930 = vmatprep.subr.mxu0 0.0
        %1931 = vmatpush1.msra.mxu0 0.0
        %1932 = vmatprep.subr.mxu0 0.0
        %1933 = vmatpush1.msra.mxu0 0.0
        %1934 = vmatprep.subr.mxu0 0.0
        %1935 = vmatpush1.msra.mxu0 0.0
        %1936 = vmatprep.subr.mxu0 0.0
        %1937 = vmatpush1.msra.mxu0 0.0
        %1938 = vmatprep.subr.mxu0 0.0
        %1939 = vmatpush1.msra.mxu0 0.0
        %1940 = vmatprep.subr.mxu0 0.0
        %1941 = vmatpush1.msra.mxu0 0.0
        %1942 = vmatprep.subr.mxu0 0.0
        %1943 = vmatpush1.msra.mxu0 0.0
        %1944 = vmatprep.subr.mxu0 0.0
        %1945 = vmatpush1.msra.mxu0 0.0
        %1946 = vmatprep.subr.mxu0 0.0
        %1947 = vmatpush1.msra.mxu0 0.0
        %1948 = vmatprep.subr.mxu0 0.0
        %1949 = vmatpush1.msra.mxu0 0.0
        %1950 = vmatprep.subr.mxu0 0.0
        %1951 = vmatpush1.msra.mxu0 0.0
        %1952 = vmatprep.subr.mxu0 0.0
        %1953 = vmatpush1.msra.mxu0 0.0
        %1954 = vmatprep.subr.mxu0 0.0
        %1955 = vmatpush1.msra.mxu0 0.0
        %1956 = vmatprep.subr.mxu0 0.0
        %1957 = vmatpush1.msra.mxu0 0.0
        %1958 = vmatprep.subr.mxu0 0.0
        %1959 = vmatpush1.msra.mxu0 0.0
        %1960 = vmatprep.subr.mxu0 0.0
        %1961 = vmatpush1.msra.mxu0 0.0
        %1962 = vmatprep.subr.mxu0 0.0
        %1963 = vmatpush1.msra.mxu0 0.0
        %1964 = vmatprep.subr.mxu0 0.0
        %1965 = vmatpush1.msra.mxu0 0.0
        %1966 = vmatprep.subr.mxu0 0.0
        %1967 = vmatpush1.msra.mxu0 0.0
        %1968 = vmatprep.subr.mxu0 0.0
        %1969 = vmatpush1.msra.mxu0 0.0
        %1970 = vmatprep.subr.mxu0 0.0
        %1971 = vmatpush1.msra.mxu0 0.0
        %1972 = vmatprep.subr.mxu0 0.0
        %1973 = vmatpush1.msra.mxu0 0.0
        %1974 = vmatprep.subr.mxu0 0.0
        %1975 = vmatpush1.msra.mxu0 0.0
        %1976 = vmatprep.subr.mxu0 0.0
        %1977 = vmatpush1.msra.mxu0 0.0
        %1978 = vmatprep.mubr.f32.mxu0 0.0
        %1979 = vmatmul.mubr.f32.gmra.mrb[0].mxu0 %v1912
        %v1980 = vpop.f32.mrb[0].mxu0
        %v1981 = vadd.f32 %v1909, %v1980
        %v1982 = vpop.f32.mrb[0].mxu0
        %1983 = vdwg.mxu0
        %v1984 = vmul.f32 %v1981, 1.442695
        %v1985 = vpow.pop %v1984
        %v1986 = vmul.f32 %v1130, %v1985
        %v1988 = vrot.slane %v1981, 1
        %v1990 = vadd.f32 %v1986, %v1988
        %s1991 = scalar_lea.vmem %s1, 64
        %v1992 = vld [vmem:[%s1991] sm:$0xff]
        %v1993 = vld [vmem:[%s1991 + $0x8] sm:$0xff]
        %1995 = vset.pattern.permute.xlu0 0
        %1996 = vperm.xlu0 %1995, %v1992
        %v1997 = vpop.permute.xlu0 %1996
        %2000 = vset.pattern.permute.xlu0 0
        %2001 = vperm.xlu0 %2000, %v1993
        %v2002 = vpop.permute.xlu0 %2001
        %v2004 = vlaneseq
        %v2005 = vshrl.u32 %v2004, 7
        %v2006 = vsub.s32 0, %v2005
        %v2007 = vrot.slane %v1990, %v2006
        %v2008 = vmul.f32 %v1997, %v2007
        %v2009 = vmul.f32 %v2002, %v2007
        %s2010 = scalar_lea.vmem %s2, 64
        %v2011 = vld [vmem:[%s2010] sm:$0xff]
        %v2012 = vld [vmem:[%s2010 + $0x8] sm:$0xff]
        %2014 = vset.pattern.permute.xlu0 0
        %2015 = vperm.xlu0 %2014, %v2011
        %v2016 = vpop.permute.xlu0 %2015
        %2019 = vset.pattern.permute.xlu0 0
        %2020 = vperm.xlu0 %2019, %v2012
        %v2021 = vpop.permute.xlu0 %2020
        %v2023 = vadd.f32 %v2008, %v2016
        %v2024 = vadd.f32 %v2009, %v2021
        %v2025 = vmul.f32 %v2023, 0.01
        %v2026 = vmul.f32 %v2024, 0.01
        %v2027 = vmax.f32 %v2023, %v2025
        %v2028 = vmax.f32 %v2024, %v2026
        %s2029 = scalar_lea.vmem %s3, 192
        %v2030 = vld [vmem:[%s2029] sm:$0xff]
        %v2031 = vld [vmem:[%s2029 + $0x8] sm:$0xff]
        %s2032 = scalar_lea.vmem %s4, 192
        %v2033 = vld [vmem:[%s2032] sm:$0xff]
        %v2034 = vld [vmem:[%s2032 + $0x8] sm:$0xff]
        %2036 = vset.pattern.permute.xlu0 0
        %2037 = vperm.xlu0 %2036, %v2033
        %v2038 = vpop.permute.xlu0 %2037
        %2041 = vset.pattern.permute.xlu0 0
        %2042 = vperm.xlu0 %2041, %v2034
        %v2043 = vpop.permute.xlu0 %2042
        %v2046 = vsel %vm326, %v2030, 0
        %v2049 = vsel %vm326, %v2031, 0
        %2051 = vmatprep.subr.mxu0 0.0
        %2052 = vmatpush1.msra.mxu0 %v2027
        %2053 = vmatprep.subr.mxu0 0.0
        %2054 = vmatpush1.msra.mxu0 %v2028
        %2055 = vmatprep.subr.mxu0 0.0
        %2056 = vmatpush1.msra.mxu0 0.0
        %2057 = vmatprep.subr.mxu0 0.0
        %2058 = vmatpush1.msra.mxu0 0.0
        %2059 = vmatprep.subr.mxu0 0.0
        %2060 = vmatpush1.msra.mxu0 0.0
        %2061 = vmatprep.subr.mxu0 0.0
        %2062 = vmatpush1.msra.mxu0 0.0
        %2063 = vmatprep.subr.mxu0 0.0
        %2064 = vmatpush1.msra.mxu0 0.0
        %2065 = vmatprep.subr.mxu0 0.0
        %2066 = vmatpush1.msra.mxu0 0.0
        %2067 = vmatprep.subr.mxu0 0.0
        %2068 = vmatpush1.msra.mxu0 0.0
        %2069 = vmatprep.subr.mxu0 0.0
        %2070 = vmatpush1.msra.mxu0 0.0
        %2071 = vmatprep.subr.mxu0 0.0
        %2072 = vmatpush1.msra.mxu0 0.0
        %2073 = vmatprep.subr.mxu0 0.0
        %2074 = vmatpush1.msra.mxu0 0.0
        %2075 = vmatprep.subr.mxu0 0.0
        %2076 = vmatpush1.msra.mxu0 0.0
        %2077 = vmatprep.subr.mxu0 0.0
        %2078 = vmatpush1.msra.mxu0 0.0
        %2079 = vmatprep.subr.mxu0 0.0
        %2080 = vmatpush1.msra.mxu0 0.0
        %2081 = vmatprep.subr.mxu0 0.0
        %2082 = vmatpush1.msra.mxu0 0.0
        %2083 = vmatprep.subr.mxu0 0.0
        %2084 = vmatpush1.msra.mxu0 0.0
        %2085 = vmatprep.subr.mxu0 0.0
        %2086 = vmatpush1.msra.mxu0 0.0
        %2087 = vmatprep.subr.mxu0 0.0
        %2088 = vmatpush1.msra.mxu0 0.0
        %2089 = vmatprep.subr.mxu0 0.0
        %2090 = vmatpush1.msra.mxu0 0.0
        %2091 = vmatprep.subr.mxu0 0.0
        %2092 = vmatpush1.msra.mxu0 0.0
        %2093 = vmatprep.subr.mxu0 0.0
        %2094 = vmatpush1.msra.mxu0 0.0
        %2095 = vmatprep.subr.mxu0 0.0
        %2096 = vmatpush1.msra.mxu0 0.0
        %2097 = vmatprep.subr.mxu0 0.0
        %2098 = vmatpush1.msra.mxu0 0.0
        %2099 = vmatprep.subr.mxu0 0.0
        %2100 = vmatpush1.msra.mxu0 0.0
        %2101 = vmatprep.subr.mxu0 0.0
        %2102 = vmatpush1.msra.mxu0 0.0
        %2103 = vmatprep.subr.mxu0 0.0
        %2104 = vmatpush1.msra.mxu0 0.0
        %2105 = vmatprep.subr.mxu0 0.0
        %2106 = vmatpush1.msra.mxu0 0.0
        %2107 = vmatprep.subr.mxu0 0.0
        %2108 = vmatpush1.msra.mxu0 0.0
        %2109 = vmatprep.subr.mxu0 0.0
        %2110 = vmatpush1.msra.mxu0 0.0
        %2111 = vmatprep.subr.mxu0 0.0
        %2112 = vmatpush1.msra.mxu0 0.0
        %2113 = vmatprep.subr.mxu0 0.0
        %2114 = vmatpush1.msra.mxu0 0.0
        %2115 = vmatprep.mubr.f32.mxu0 0.0
        %2116 = vmatmul.mubr.f32.gmra.mrb[0].mxu0 %v2046
        %v2117 = vpop.f32.mrb[0].mxu0
        %v2118 = vadd.f32 %v2038, %v2117
        %v2119 = vpop.f32.mrb[0].mxu0
        %2120 = vmatprep.mubr.f32.mxu0 0.0
        %2121 = vmatmul.mubr.f32.gmra.mrb[0].mxu0 %v2049
        %v2122 = vpop.f32.mrb[0].mxu0
        %v2123 = vadd.f32 %v2043, %v2122
        %v2124 = vpop.f32.mrb[0].mxu0
        %2125 = vdwg.mxu0
        %v2126 = vmul.f32 %v2118, 0.01
        %v2127 = vmul.f32 %v2123, 0.01
        %v2128 = vmax.f32 %v2118, %v2126
        %v2129 = vmax.f32 %v2123, %v2127
        %s2130 = scalar_lea.vmem %s3, 208
        %v2131 = vld [vmem:[%s2130] sm:$0xff]
        %v2132 = vld [vmem:[%s2130 + $0x8] sm:$0xff]
        %s2133 = scalar_lea.vmem %s4, 208
        %v2134 = vld [vmem:[%s2133] sm:$0xff]
        %v2135 = vld [vmem:[%s2133 + $0x8] sm:$0xff]
        %2137 = vset.pattern.permute.xlu0 0
        %2138 = vperm.xlu0 %2137, %v2134
        %v2139 = vpop.permute.xlu0 %2138
        %2142 = vset.pattern.permute.xlu0 0
        %2143 = vperm.xlu0 %2142, %v2135
        %v2144 = vpop.permute.xlu0 %2143
        %v2147 = vsel %vm326, %v2131, 0
        %v2150 = vsel %vm326, %v2132, 0
        %2152 = vmatprep.subr.mxu0 0.0
        %2153 = vmatpush1.msra.mxu0 %v2128
        %2154 = vmatprep.subr.mxu0 0.0
        %2155 = vmatpush1.msra.mxu0 %v2129
        %2156 = vmatprep.subr.mxu0 0.0
        %2157 = vmatpush1.msra.mxu0 0.0
        %2158 = vmatprep.subr.mxu0 0.0
        %2159 = vmatpush1.msra.mxu0 0.0
        %2160 = vmatprep.subr.mxu0 0.0
        %2161 = vmatpush1.msra.mxu0 0.0
        %2162 = vmatprep.subr.mxu0 0.0
        %2163 = vmatpush1.msra.mxu0 0.0
        %2164 = vmatprep.subr.mxu0 0.0
        %2165 = vmatpush1.msra.mxu0 0.0
        %2166 = vmatprep.subr.mxu0 0.0
        %2167 = vmatpush1.msra.mxu0 0.0
        %2168 = vmatprep.subr.mxu0 0.0
        %2169 = vmatpush1.msra.mxu0 0.0
        %2170 = vmatprep.subr.mxu0 0.0
        %2171 = vmatpush1.msra.mxu0 0.0
        %2172 = vmatprep.subr.mxu0 0.0
        %2173 = vmatpush1.msra.mxu0 0.0
        %2174 = vmatprep.subr.mxu0 0.0
        %2175 = vmatpush1.msra.mxu0 0.0
        %2176 = vmatprep.subr.mxu0 0.0
        %2177 = vmatpush1.msra.mxu0 0.0
        %2178 = vmatprep.subr.mxu0 0.0
        %2179 = vmatpush1.msra.mxu0 0.0
        %2180 = vmatprep.subr.mxu0 0.0
        %2181 = vmatpush1.msra.mxu0 0.0
        %2182 = vmatprep.subr.mxu0 0.0
        %2183 = vmatpush1.msra.mxu0 0.0
        %2184 = vmatprep.subr.mxu0 0.0
        %2185 = vmatpush1.msra.mxu0 0.0
        %2186 = vmatprep.subr.mxu0 0.0
        %2187 = vmatpush1.msra.mxu0 0.0
        %2188 = vmatprep.subr.mxu0 0.0
        %2189 = vmatpush1.msra.mxu0 0.0
        %2190 = vmatprep.subr.mxu0 0.0
        %2191 = vmatpush1.msra.mxu0 0.0
        %2192 = vmatprep.subr.mxu0 0.0
        %2193 = vmatpush1.msra.mxu0 0.0
        %2194 = vmatprep.subr.mxu0 0.0
        %2195 = vmatpush1.msra.mxu0 0.0
        %2196 = vmatprep.subr.mxu0 0.0
        %2197 = vmatpush1.msra.mxu0 0.0
        %2198 = vmatprep.subr.mxu0 0.0
        %2199 = vmatpush1.msra.mxu0 0.0
        %2200 = vmatprep.subr.mxu0 0.0
        %2201 = vmatpush1.msra.mxu0 0.0
        %2202 = vmatprep.subr.mxu0 0.0
        %2203 = vmatpush1.msra.mxu0 0.0
        %2204 = vmatprep.subr.mxu0 0.0
        %2205 = vmatpush1.msra.mxu0 0.0
        %2206 = vmatprep.subr.mxu0 0.0
        %2207 = vmatpush1.msra.mxu0 0.0
        %2208 = vmatprep.subr.mxu0 0.0
        %2209 = vmatpush1.msra.mxu0 0.0
        %2210 = vmatprep.subr.mxu0 0.0
        %2211 = vmatpush1.msra.mxu0 0.0
        %2212 = vmatprep.subr.mxu0 0.0
        %2213 = vmatpush1.msra.mxu0 0.0
        %2214 = vmatprep.subr.mxu0 0.0
        %2215 = vmatpush1.msra.mxu0 0.0
        %2216 = vmatprep.mubr.f32.mxu0 0.0
        %2217 = vmatmul.mubr.f32.gmra.mrb[0].mxu0 %v2147
        %v2218 = vpop.f32.mrb[0].mxu0
        %v2219 = vadd.f32 %v2139, %v2218
        %v2220 = vpop.f32.mrb[0].mxu0
        %2221 = vmatprep.mubr.f32.mxu0 0.0
        %2222 = vmatmul.mubr.f32.gmra.mrb[0].mxu0 %v2150
        %v2223 = vpop.f32.mrb[0].mxu0
        %v2224 = vadd.f32 %v2144, %v2223
        %v2225 = vpop.f32.mrb[0].mxu0
        %2226 = vdwg.mxu0
        %v2227 = vmul.f32 %v2219, 0.01
        %v2228 = vmul.f32 %v2224, 0.01
        %v2229 = vmax.f32 %v2219, %v2227
        %v2230 = vmax.f32 %v2224, %v2228
        %s2231 = scalar_lea.vmem %s3, 224
        %v2232 = vld [vmem:[%s2231] sm:$0xff]
        %v2233 = vld [vmem:[%s2231 + $0x8] sm:$0xff]
        %s2234 = scalar_lea.vmem %s4, 224
        %v2235 = vld [vmem:[%s2234] sm:$0xff]
        %v2236 = vld [vmem:[%s2234 + $0x8] sm:$0xff]
        %2238 = vset.pattern.permute.xlu0 0
        %2239 = vperm.xlu0 %2238, %v2235
        %v2240 = vpop.permute.xlu0 %2239
        %2243 = vset.pattern.permute.xlu0 0
        %2244 = vperm.xlu0 %2243, %v2236
        %v2245 = vpop.permute.xlu0 %2244
        %v2248 = vsel %vm326, %v2232, 0
        %v2251 = vsel %vm326, %v2233, 0
        %2253 = vmatprep.subr.mxu0 0.0
        %2254 = vmatpush1.msra.mxu0 %v2229
        %2255 = vmatprep.subr.mxu0 0.0
        %2256 = vmatpush1.msra.mxu0 %v2230
        %2257 = vmatprep.subr.mxu0 0.0
        %2258 = vmatpush1.msra.mxu0 0.0
        %2259 = vmatprep.subr.mxu0 0.0
        %2260 = vmatpush1.msra.mxu0 0.0
        %2261 = vmatprep.subr.mxu0 0.0
        %2262 = vmatpush1.msra.mxu0 0.0
        %2263 = vmatprep.subr.mxu0 0.0
        %2264 = vmatpush1.msra.mxu0 0.0
        %2265 = vmatprep.subr.mxu0 0.0
        %2266 = vmatpush1.msra.mxu0 0.0
        %2267 = vmatprep.subr.mxu0 0.0
        %2268 = vmatpush1.msra.mxu0 0.0
        %2269 = vmatprep.subr.mxu0 0.0
        %2270 = vmatpush1.msra.mxu0 0.0
        %2271 = vmatprep.subr.mxu0 0.0
        %2272 = vmatpush1.msra.mxu0 0.0
        %2273 = vmatprep.subr.mxu0 0.0
        %2274 = vmatpush1.msra.mxu0 0.0
        %2275 = vmatprep.subr.mxu0 0.0
        %2276 = vmatpush1.msra.mxu0 0.0
        %2277 = vmatprep.subr.mxu0 0.0
        %2278 = vmatpush1.msra.mxu0 0.0
        %2279 = vmatprep.subr.mxu0 0.0
        %2280 = vmatpush1.msra.mxu0 0.0
        %2281 = vmatprep.subr.mxu0 0.0
        %2282 = vmatpush1.msra.mxu0 0.0
        %2283 = vmatprep.subr.mxu0 0.0
        %2284 = vmatpush1.msra.mxu0 0.0
        %2285 = vmatprep.subr.mxu0 0.0
        %2286 = vmatpush1.msra.mxu0 0.0
        %2287 = vmatprep.subr.mxu0 0.0
        %2288 = vmatpush1.msra.mxu0 0.0
        %2289 = vmatprep.subr.mxu0 0.0
        %2290 = vmatpush1.msra.mxu0 0.0
        %2291 = vmatprep.subr.mxu0 0.0
        %2292 = vmatpush1.msra.mxu0 0.0
        %2293 = vmatprep.subr.mxu0 0.0
        %2294 = vmatpush1.msra.mxu0 0.0
        %2295 = vmatprep.subr.mxu0 0.0
        %2296 = vmatpush1.msra.mxu0 0.0
        %2297 = vmatprep.subr.mxu0 0.0
        %2298 = vmatpush1.msra.mxu0 0.0
        %2299 = vmatprep.subr.mxu0 0.0
        %2300 = vmatpush1.msra.mxu0 0.0
        %2301 = vmatprep.subr.mxu0 0.0
        %2302 = vmatpush1.msra.mxu0 0.0
        %2303 = vmatprep.subr.mxu0 0.0
        %2304 = vmatpush1.msra.mxu0 0.0
        %2305 = vmatprep.subr.mxu0 0.0
        %2306 = vmatpush1.msra.mxu0 0.0
        %2307 = vmatprep.subr.mxu0 0.0
        %2308 = vmatpush1.msra.mxu0 0.0
        %2309 = vmatprep.subr.mxu0 0.0
        %2310 = vmatpush1.msra.mxu0 0.0
        %2311 = vmatprep.subr.mxu0 0.0
        %2312 = vmatpush1.msra.mxu0 0.0
        %2313 = vmatprep.subr.mxu0 0.0
        %2314 = vmatpush1.msra.mxu0 0.0
        %2315 = vmatprep.subr.mxu0 0.0
        %2316 = vmatpush1.msra.mxu0 0.0
        %2317 = vmatprep.mubr.f32.mxu0 0.0
        %2318 = vmatmul.mubr.f32.gmra.mrb[0].mxu0 %v2248
        %v2319 = vpop.f32.mrb[0].mxu0
        %v2320 = vadd.f32 %v2240, %v2319
        %v2321 = vpop.f32.mrb[0].mxu0
        %2322 = vmatprep.mubr.f32.mxu0 0.0
        %2323 = vmatmul.mubr.f32.gmra.mrb[0].mxu0 %v2251
        %v2324 = vpop.f32.mrb[0].mxu0
        %v2325 = vadd.f32 %v2245, %v2324
        %v2326 = vpop.f32.mrb[0].mxu0
        %2327 = vdwg.mxu0
        %v2328 = vmul.f32 %v2320, 0.01
        %v2329 = vmul.f32 %v2325, 0.01
        %v2330 = vmax.f32 %v2320, %v2328
        %v2331 = vmax.f32 %v2325, %v2329
        %s2332 = scalar_lea.vmem %s5, 8
        %v2333 = vld [vmem:[%s2332] sm:$0x3]
        %s2334 = scalar_lea.vmem %s6, 8
        %v2335 = vld [vmem:[%s2334] sm:$0x3]
        %2337 = vset.pattern.permute.xlu0 0
        %2338 = vperm.xlu0 %2337, %v2335
        %v2339 = vpop.permute.xlu0 %2338
        %v2342 = vsel %vm326, %v2333, 0
        %2344 = vmatprep.subr.mxu0 0.0
        %2345 = vmatpush1.msra.mxu0 %v2330
        %2346 = vmatprep.subr.mxu0 0.0
        %2347 = vmatpush1.msra.mxu0 %v2331
        %2348 = vmatprep.subr.mxu0 0.0
        %2349 = vmatpush1.msra.mxu0 0.0
        %2350 = vmatprep.subr.mxu0 0.0
        %2351 = vmatpush1.msra.mxu0 0.0
        %2352 = vmatprep.subr.mxu0 0.0
        %2353 = vmatpush1.msra.mxu0 0.0
        %2354 = vmatprep.subr.mxu0 0.0
        %2355 = vmatpush1.msra.mxu0 0.0
        %2356 = vmatprep.subr.mxu0 0.0
        %2357 = vmatpush1.msra.mxu0 0.0
        %2358 = vmatprep.subr.mxu0 0.0
        %2359 = vmatpush1.msra.mxu0 0.0
        %2360 = vmatprep.subr.mxu0 0.0
        %2361 = vmatpush1.msra.mxu0 0.0
        %2362 = vmatprep.subr.mxu0 0.0
        %2363 = vmatpush1.msra.mxu0 0.0
        %2364 = vmatprep.subr.mxu0 0.0
        %2365 = vmatpush1.msra.mxu0 0.0
        %2366 = vmatprep.subr.mxu0 0.0
        %2367 = vmatpush1.msra.mxu0 0.0
        %2368 = vmatprep.subr.mxu0 0.0
        %2369 = vmatpush1.msra.mxu0 0.0
        %2370 = vmatprep.subr.mxu0 0.0
        %2371 = vmatpush1.msra.mxu0 0.0
        %2372 = vmatprep.subr.mxu0 0.0
        %2373 = vmatpush1.msra.mxu0 0.0
        %2374 = vmatprep.subr.mxu0 0.0
        %2375 = vmatpush1.msra.mxu0 0.0
        %2376 = vmatprep.subr.mxu0 0.0
        %2377 = vmatpush1.msra.mxu0 0.0
        %2378 = vmatprep.subr.mxu0 0.0
        %2379 = vmatpush1.msra.mxu0 0.0
        %2380 = vmatprep.subr.mxu0 0.0
        %2381 = vmatpush1.msra.mxu0 0.0
        %2382 = vmatprep.subr.mxu0 0.0
        %2383 = vmatpush1.msra.mxu0 0.0
        %2384 = vmatprep.subr.mxu0 0.0
        %2385 = vmatpush1.msra.mxu0 0.0
        %2386 = vmatprep.subr.mxu0 0.0
        %2387 = vmatpush1.msra.mxu0 0.0
        %2388 = vmatprep.subr.mxu0 0.0
        %2389 = vmatpush1.msra.mxu0 0.0
        %2390 = vmatprep.subr.mxu0 0.0
        %2391 = vmatpush1.msra.mxu0 0.0
        %2392 = vmatprep.subr.mxu0 0.0
        %2393 = vmatpush1.msra.mxu0 0.0
        %2394 = vmatprep.subr.mxu0 0.0
        %2395 = vmatpush1.msra.mxu0 0.0
        %2396 = vmatprep.subr.mxu0 0.0
        %2397 = vmatpush1.msra.mxu0 0.0
        %2398 = vmatprep.subr.mxu0 0.0
        %2399 = vmatpush1.msra.mxu0 0.0
        %2400 = vmatprep.subr.mxu0 0.0
        %2401 = vmatpush1.msra.mxu0 0.0
        %2402 = vmatprep.subr.mxu0 0.0
        %2403 = vmatpush1.msra.mxu0 0.0
        %2404 = vmatprep.subr.mxu0 0.0
        %2405 = vmatpush1.msra.mxu0 0.0
        %2406 = vmatprep.subr.mxu0 0.0
        %2407 = vmatpush1.msra.mxu0 0.0
        %2408 = vmatprep.mubr.f32.mxu0 0.0
        %2409 = vmatmul.mubr.f32.gmra.mrb[0].mxu0 %v2342
        %v2410 = vpop.f32.mrb[0].mxu0
        %v2411 = vadd.f32 %v2339, %v2410
        %v2412 = vpop.f32.mrb[0].mxu0
        %2413 = vdwg.mxu0
        %v2414 = vmul.f32 %v2411, 1.442695
        %v2415 = vpow.pop %v2414
        %v2416 = vmul.f32 %v1560, %v2415
        %v2418 = vrot.slane %v2411, 1
        %v2420 = vadd.f32 %v2416, %v2418
        %2421 = vst [vmem:[%s269] sm:$0x1] %v1990
        %2422 = vst [vmem:[%s269 + $0x1] sm:$0x1] %v2420
        %s2423 = sand.u32 %s181, 1
        %s2424 = scalar_lea.sflag [#allocation3], %s2423
        %s2425 = sand.u32 %s181, 1
        %s2426 = smul.addr %s2425, 2
        %s2427 = scalar_lea.vmem [#allocation2], %s2426
        // Predicated region
        $region49: #{tpu_custom_call.1} parent=47 // pred_check
          %p2428 = pneg %p191
        $region50: #{tpu_custom_call.1} parent=47 // pred_check_branch
          %2430 = sbr.rel (%p2428) target = $region52
        $region51: #{tpu_custom_call.1} parent=47 // pred_region
          %s2432 = ssub.s32 32, 32
          %2433 = vsyncadd %s2424, %s2432
          %s2434 = smul.addr %s21, 32
          %s2435 = scalar_lea.hbm %s7, %s2434
          %s2437 = sshll.u32 %s2427, 4
          %s2438 = int_to_ptr.vmem [resolvable:$true] %s2437
          %2440 = dma.vmem_to_hbm [thread:$0]  %s2438, 32, %s2435, %s2424
        $region52: #{tpu_custom_call.1} parent=47 // pred_fallthru
          _
      $region48: #{tpu_custom_call.1} parent=5 // pred_fallthru
        _
      %p2441 = scmp.le.s32.totalorder 2, %s16
      // Predicated region
      $region53: #{tpu_custom_call.1} parent=5 // pred_check
        %p2442 = pneg %p2441
      $region54: #{tpu_custom_call.1} parent=5 // pred_check_branch
        %2444 = sbr.rel (%p2442) target = $region56
      $region55: #{tpu_custom_call.1} parent=5 // pred_region
        %s2445 = ssub.s32 %s16, 2
        // Predicated region
        $region57: #{tpu_custom_call.1} parent=55 // pred_check
          %p2446 = pneg %p197
        $region58: #{tpu_custom_call.1} parent=55 // pred_check_branch
          %2448 = sbr.rel (%p2446) target = $region60
        $region59: #{tpu_custom_call.1} parent=55 // pred_region
          %s2449 = sand.u32 %s182, 1
          %s2450 = scalar_lea.sflag [#allocation3], %s2449
          %s2451 = sand.u32 %s182, 1
          %s2452 = smul.addr %s2451, 2
          %s2453 = scalar_lea.vmem [#allocation2], %s2452
          %2454 = dma.done %s2450, 32
        $region60: #{tpu_custom_call.1} parent=55 // pred_fallthru
          _
      $region56: #{tpu_custom_call.1} parent=5 // pred_fallthru
        _
    $region6: #{tpu_custom_call.1} parent=1 // loop_footer
      %s20 = sadd.s32 1, %s16
    $region7: #{tpu_custom_call.1} parent=1 // loop_footer_branch
      %15 = sbr.rel target = $region3
    $region8: #{tpu_custom_call.1} parent=1 // loop_exit
      _
    %2455 = vsyncpa [#allocation3], 1
    %s2456 = scalar_lea.sflag [#allocation3], 1
    %2457 = vsyncpa %s2456, 1

</llo_original>
